<compile_context>
chip_gen: v7x
topology: tpu7x:2x2x1
jax: 0.10.0
libtpu: 0.0.40
codegen_flags: <defaults>
</compile_context>

<pallas_src>
import functools
import math

import jax
import jax.numpy as jnp
from jax.experimental import pallas as pl
from jax.experimental.pallas import tpu as pltpu


# Known-good scoped-VMEM budget (fits every generation).  Raise toward
# 96-112 MiB on v6e (128 MiB physical) together with seq_tile=256.
DEFAULT_VMEM_LIMIT_BYTES = 48 * 1024 * 1024


def _round_up(n, m):
    return ((n + m - 1) // m) * m


def _layer_norm(x, gamma, beta, eps=1e-5):
    # PyTorch nn.LayerNorm: biased variance, eps inside the sqrt.
    mu = jnp.mean(x, axis=-1, keepdims=True)
    xc = x - mu
    var = jnp.mean(xc * xc, axis=-1, keepdims=True)
    return xc * jax.lax.rsqrt(var + eps) * gamma + beta


# ---------------------------------------------------------------------------
# Kernel 1: fused QKV projection, head-major outputs.  grid = (B, S_pad // ts)
# ---------------------------------------------------------------------------
def _qkv_proj_kernel(x_ref, wqkv_ref, q_ref, k_ref, v_ref, *,
                     n_head, d_q, d_k, d_v):
    x = x_ref[0]                                                # (ts, D) compute_dtype
    # One wide MXU pass: N = H*(d_q + d_k + d_v).
    qkv = jnp.dot(x, wqkv_ref[...], preferred_element_type=jnp.float32)
    oq = n_head * d_q
    ok = oq + n_head * d_k
    # Head-major stores: the slab split/store is cheap XLU/VPU work hidden
    # under the matmul and removes the XLA transpose HBM round trip.
    for h in range(n_head):
        q_ref[0, h] = qkv[:, h * d_q:(h + 1) * d_q].astype(q_ref.dtype)
        k_ref[0, h] = qkv[:, oq + h * d_k: oq + (h + 1) * d_k].astype(k_ref.dtype)
        v_ref[0, h] = qkv[:, ok + h * d_v: ok + (h + 1) * d_v].astype(v_ref.dtype)


# ---------------------------------------------------------------------------
# Kernel 2: attention + out-proj + LN1 + FFN + LN2.  grid = (B, S_pad // tq)
# ---------------------------------------------------------------------------
def _encoder_block_kernel(x_ref, q_ref, k_ref, v_ref, fc_w_ref,
                          ln1_g_ref, ln1_b_ref, fc1_w_ref, fc1_b_ref,
                          fc2_w_ref, fc2_b_ref, ln2_g_ref, ln2_b_ref,
                          out_ref, attn_ref, *,
                          scale, compute_dtype, exp_dtype, kv_len, n_head):
    x = x_ref[0]                        # (tq, D)        f32 residual path
    q = q_ref[0]                        # (H, tq, d_q)   compute_dtype
    k = k_ref[0]                        # (H, S_pad, d_k)
    v = v_ref[0]                        # (H, S_pad, d_v)
    s_pad = k.shape[1]

    # ---- multi-head attention: head-batched logits contraction ----
    logits = jnp.einsum("hqd,hkd->hqk", q, k,
                        preferred_element_type=jnp.float32) * scale   # (H,tq,S_pad)
    if kv_len < s_pad:                  # mask padded key positions (static)
        key_idx = jax.lax.broadcasted_iota(jnp.int32, logits.shape, dimension=2)
        logits = jnp.where(key_idx < kv_len, logits, -1e30)

    m = jnp.max(logits, axis=-1, keepdims=True)
    z = logits - m
    # bf16 exp on v6e/v7x roughly halves the EUP-limited softmax portion.
    e = jnp.exp(z.astype(exp_dtype)).astype(jnp.float32)
    denom = jnp.sum(e, axis=-1, keepdims=True)
    p = e * pl.reciprocal(denom, approx=True)                        # softmax
    attn_ref[0] = p.astype(attn_ref.dtype)

    ctx = jnp.einsum("hqk,hkd->hqd", p.astype(compute_dtype), v,
                     preferred_element_type=jnp.float32)             # (H,tq,d_v)

    # ---- output projection: concat heads along lanes, ONE wide contraction
    #      over H*d_v (== concat(heads) @ Wfc) — fills the MXU instead of
    #      quarter-filling it per head, no H x (tq, D) f32 intermediates.
    ctx2d = jnp.concatenate([ctx[h] for h in range(n_head)],
                            axis=-1).astype(compute_dtype)           # (tq, H*d_v)
    proj = jnp.dot(ctx2d, fc_w_ref[...],
                   preferred_element_type=jnp.float32)               # (tq, D)

    y = _layer_norm(proj + x, ln1_g_ref[0], ln1_b_ref[0])            # LN1 (f32)

    # ---- feed-forward + residual + LN2 ----
    h1 = jnp.dot(y.astype(compute_dtype), fc1_w_ref[...],
                 preferred_element_type=jnp.float32) + fc1_b_ref[0]
    h1 = jnp.maximum(h1, 0.0)
    h2 = jnp.dot(h1.astype(compute_dtype), fc2_w_ref[...],
                 preferred_element_type=jnp.float32) + fc2_b_ref[0]
    out_ref[0] = _layer_norm(h2 + y, ln2_g_ref[0], ln2_b_ref[0]).astype(out_ref.dtype)


# ---------------------------------------------------------------------------
# Wrapper
# ---------------------------------------------------------------------------
@functools.partial(
    jax.jit,
    static_argnames=("n_head", "d_q", "d_k", "d_v", "d_model", "dim_ff",
                     "compute_dtype", "attn_dtype", "seq_tile",
                     "low_precision_exp", "single_buffer_kv",
                     "vmem_limit_bytes"))
def encoder_layer(x, params, *, n_head, d_q, d_k, d_v, d_model, dim_ff,
                  compute_dtype=jnp.bfloat16, attn_dtype=None, seq_tile=128,
                  low_precision_exp=True, single_buffer_kv=False,
                  vmem_limit_bytes=DEFAULT_VMEM_LIMIT_BYTES):
    """encoderLayer forward.  Returns (score [B,S,D], attn [B,H,S,S]).

    Attention scale is 1/sqrt(d_model), matching the PyTorch DotScore.
    Per-chip tuning: v6e -> seq_tile=256, vmem_limit_bytes~100 MiB;
    v7x -> seq_tile=128, single_buffer_kv=True, attn_dtype=bf16 (default);
    v5e -> seq_tile=128, low_precision_exp=False.
    """
    B, S, D = x.shape
    assert D == d_model
    assert seq_tile % 8 == 0
    if attn_dtype is None:
        attn_dtype = compute_dtype
    exp_dtype = compute_dtype if low_precision_exp else jnp.float32

    (wq, wk, wv, fc_w, ln1_g, ln1_b,
     fc1_w, fc1_b, fc2_w, fc2_b, ln2_g, ln2_b) = params
    assert fc1_w.shape == (d_model, dim_ff) and fc2_w.shape == (dim_ff, d_model)

    # Pad the sequence up to a multiple of the tile so the pipelined fast path
    # is always taken (padded keys are masked in-kernel, padded rows sliced off).
    ts = min(seq_tile, _round_up(S, 8))
    s_pad = _round_up(S, ts)

    x32 = x.astype(jnp.float32)
    if s_pad != S:
        x32 = jnp.pad(x32, ((0, 0), (0, s_pad - S), (0, 0)))
    x_lp = x32.astype(compute_dtype)          # compute-dtype copy for kernel 1

    # Fused QKV weight: one (D, H*(dq+dk+dv)) matrix.
    wqkv = jnp.concatenate([wq, wk, wv], axis=1).astype(compute_dtype)

    # Whole-array VMEM residency: fetched once, single copy (no double-buffer).
    resident = pl.BlockSpec(memory_space=pltpu.MemorySpace.VMEM)

    # ---- kernel 1: fused QKV projection, head-major outputs ----
    qkv_grid = pltpu.PrefetchScalarGridSpec(
        num_scalar_prefetch=0,
        grid=(B, s_pad // ts),
        in_specs=[pl.BlockSpec((1, ts, D), lambda b, s: (b, s, 0)), resident],
        out_specs=[
            pl.BlockSpec((1, n_head, ts, d_q), lambda b, s: (b, 0, s, 0)),
            pl.BlockSpec((1, n_head, ts, d_k), lambda b, s: (b, 0, s, 0)),
            pl.BlockSpec((1, n_head, ts, d_v), lambda b, s: (b, 0, s, 0)),
        ])
    q, k, v = pl.pallas_call(
        functools.partial(_qkv_proj_kernel, n_head=n_head,
                          d_q=d_q, d_k=d_k, d_v=d_v),
        grid_spec=qkv_grid,
        out_shape=(
            jax.ShapeDtypeStruct((B, n_head, s_pad, d_q), compute_dtype),
            jax.ShapeDtypeStruct((B, n_head, s_pad, d_k), compute_dtype),
            jax.ShapeDtypeStruct((B, n_head, s_pad, d_v), compute_dtype),
        ),
        compiler_params=pltpu.CompilerParams(
            dimension_semantics=("parallel", "parallel"),
            vmem_limit_bytes=vmem_limit_bytes),
    )(x_lp, wqkv)

    # ---- kernel 2: attention + out-proj + LN1 + FFN + LN2 ----
    # K/V block index only changes per batch; single-buffer them on v7x to
    # halve their VMEM footprint (64 MiB per-TC budget).
    kv_kwargs = dict(pipeline_mode=pl.Buffered(1)) if single_buffer_kv else {}
    k_spec = pl.BlockSpec((1, n_head, s_pad, d_k), lambda b, qi: (b, 0, 0, 0),
                          **kv_kwargs)
    v_spec = pl.BlockSpec((1, n_head, s_pad, d_v), lambda b, qi: (b, 0, 0, 0),
                          **kv_kwargs)

    block_grid = pltpu.PrefetchScalarGridSpec(
        num_scalar_prefetch=0,
        grid=(B, s_pad // ts),
        in_specs=[
            pl.BlockSpec((1, ts, D), lambda b, qi: (b, qi, 0)),               # x residual (f32)
            pl.BlockSpec((1, n_head, ts, d_q), lambda b, qi: (b, 0, qi, 0)),  # q tile
            k_spec,                                                           # k full seq
            v_spec,                                                           # v full seq
            resident,                       # fc_w  (H*dv, D)
            resident, resident,             # ln1 gamma / beta
            resident, resident,             # fc1 w / b
            resident, resident,             # fc2 w / b
            resident, resident,             # ln2 gamma / beta
        ],
        out_specs=[
            pl.BlockSpec((1, ts, D), lambda b, qi: (b, qi, 0)),
            pl.BlockSpec((1, n_head, ts, s_pad), lambda b, qi: (b, 0, qi, 0)),
        ])

    kernel = functools.partial(_encoder_block_kernel,
                               scale=1.0 / math.sqrt(d_model),
                               compute_dtype=compute_dtype,
                               exp_dtype=exp_dtype,
                               kv_len=S, n_head=n_head)

    score, attn = pl.pallas_call(
        kernel,
        grid_spec=block_grid,
        out_shape=(
            jax.ShapeDtypeStruct((B, s_pad, D), jnp.float32),
            jax.ShapeDtypeStruct((B, n_head, s_pad, s_pad), attn_dtype),
        ),
        compiler_params=pltpu.CompilerParams(
            dimension_semantics=("parallel", "parallel"),
            vmem_limit_bytes=vmem_limit_bytes),
    )(
        x32, q, k, v, fc_w.astype(compute_dtype),
        ln1_g.astype(jnp.float32), ln1_b.astype(jnp.float32),
        fc1_w.astype(compute_dtype), fc1_b.astype(jnp.float32),
        fc2_w.astype(compute_dtype), fc2_b.astype(jnp.float32),
        ln2_g.astype(jnp.float32), ln2_b.astype(jnp.float32),
    )

    if s_pad != S:
        score = score[:, :S]
        attn = attn[:, :, :S, :S]
    return score, attn


# ---------------------------------------------------------------------------
# Pure-JAX reference (mirrors the PyTorch forward, f32 everywhere)
# ---------------------------------------------------------------------------
def encoder_layer_ref(x, params, *, n_head, d_q, d_k, d_v, d_model, dim_ff):
    (wq, wk, wv, fc_w, ln1_g, ln1_b,
     fc1_w, fc1_b, fc2_w, fc2_b, ln2_g, ln2_b) = params
    B, S, D = x.shape

    def ln(y, g, b, eps=1e-5):
        mu = jnp.mean(y, -1, keepdims=True)
        var = jnp.mean((y - mu) ** 2, -1, keepdims=True)
        return (y - mu) / jnp.sqrt(var + eps) * g + b

    q = (x @ wq).reshape(B, S, n_head, d_q).transpose(0, 2, 1, 3)
    k = (x @ wk).reshape(B, S, n_head, d_k).transpose(0, 2, 1, 3)
    v = (x @ wv).reshape(B, S, n_head, d_v).transpose(0, 2, 1, 3)
    logits = jnp.einsum("bhsd,bhtd->bhst", q, k) / math.sqrt(d_model)
    attn = jax.nn.softmax(logits, axis=-1)
    score = jnp.einsum("bhst,bhtd->bhsd", attn, v)
    score = score.transpose(0, 2, 1, 3).reshape(B, S, n_head * d_v)
    score = score @ fc_w
    score = ln(score + x, ln1_g[0], ln1_b[0])
    h1 = jnp.maximum(score @ fc1_w + fc1_b[0], 0.0)
    h2 = h1 @ fc2_w + fc2_b[0]
    out = ln(h2 + score, ln2_g[0], ln2_b[0])
    return out, attn


# ---------------------------------------------------------------------------
if __name__ == "__main__":
    # Small, module-consistent shapes.
    B, S = 2, 8
    d_model, n_head = 32, 4
    d_q = d_k = d_v = 8
    dim_ff = 64

    key = jax.random.PRNGKey(0)
    keys = jax.random.split(key, 8)

    x = jax.random.normal(keys[0], (B, S, d_model), dtype=jnp.float32)

    s = 0.1
    wq = s * jax.random.normal(keys[1], (d_model, n_head * d_q), dtype=jnp.float32)
    wk = s * jax.random.normal(keys[2], (d_model, n_head * d_k), dtype=jnp.float32)
    wv = s * jax.random.normal(keys[3], (d_model, n_head * d_v), dtype=jnp.float32)
    fc_w = s * jax.random.normal(keys[4], (n_head * d_v, d_model), dtype=jnp.float32)
    ln1_g = jnp.ones((1, d_model), jnp.float32)
    ln1_b = jnp.zeros((1, d_model), jnp.float32)
    fc1_w = s * jax.random.normal(keys[5], (d_model, dim_ff), dtype=jnp.float32)
    fc1_b = s * jax.random.normal(keys[6], (1, dim_ff), dtype=jnp.float32)
    fc2_w = s * jax.random.normal(keys[7], (dim_ff, d_model), dtype=jnp.float32)
    fc2_b = jnp.zeros((1, d_model), jnp.float32)
    ln2_g = jnp.ones((1, d_model), jnp.float32)
    ln2_b = jnp.zeros((1, d_model), jnp.float32)

    params = (wq, wk, wv, fc_w, ln1_g, ln1_b, fc1_w, fc1_b, fc2_w, fc2_b,
              ln2_g, ln2_b)
    kwargs = dict(n_head=n_head, d_q=d_q, d_k=d_k, d_v=d_v,
                  d_model=d_model, dim_ff=dim_ff)

    score_ref, attn_ref_arr = encoder_layer_ref(x, params, **kwargs)

    # f32 path: f32 MXU, f32 exp, f32 attn — only the approx EUP reciprocal in
    # the softmax differs from the pure-JAX reference of the PyTorch module.
    s32, a32 = encoder_layer(x, params, compute_dtype=jnp.float32, **kwargs)
    jax.block_until_ready((s32, a32))
    assert s32.shape == (B, S, d_model) and a32.shape == (B, n_head, S, S)
    assert jnp.allclose(s32, score_ref, atol=5e-3, rtol=5e-3)
    assert jnp.allclose(a32, attn_ref_arr, atol=5e-3, rtol=5e-3)

    # bf16 path (default performance configuration: bf16 MXU, bf16 exp,
    # bf16 attn writeback): looser tolerance.
    s16, a16 = encoder_layer(x, params, compute_dtype=jnp.bfloat16, **kwargs)
    jax.block_until_ready((s16, a16))
    assert s16.shape == (B, S, d_model) and a16.shape == (B, n_head, S, S)
    assert jnp.allclose(s16, score_ref, atol=5e-2, rtol=5e-2)
    assert jnp.allclose(a16, attn_ref_arr, atol=4e-2, rtol=4e-2)

    print("KERNEL_OK")
</pallas_src>

<mosaic_0001>
module attributes {stable_mosaic.version = 11 : i64} {
  func.func @_encoder_block_kernel(%arg0: i32, %arg1: i32, %arg2: memref<1x8x32xf32, #tpu.memory_space<vmem>>, %arg3: memref<1x4x8x8xf32, #tpu.memory_space<vmem>>, %arg4: memref<1x4x8x8xf32, #tpu.memory_space<vmem>>, %arg5: memref<1x4x8x8xf32, #tpu.memory_space<vmem>>, %arg6: memref<32x32xf32, #tpu.memory_space<vmem>>, %arg7: memref<1x32xf32, #tpu.memory_space<vmem>>, %arg8: memref<1x32xf32, #tpu.memory_space<vmem>>, %arg9: memref<32x64xf32, #tpu.memory_space<vmem>>, %arg10: memref<1x64xf32, #tpu.memory_space<vmem>>, %arg11: memref<64x32xf32, #tpu.memory_space<vmem>>, %arg12: memref<1x32xf32, #tpu.memory_space<vmem>>, %arg13: memref<1x32xf32, #tpu.memory_space<vmem>>, %arg14: memref<1x32xf32, #tpu.memory_space<vmem>>, %arg15: memref<1x8x32xf32, #tpu.memory_space<vmem>>, %arg16: memref<1x4x8x8xf32, #tpu.memory_space<vmem>>) attributes {dimension_semantics = [#tpu.dimension_semantics<parallel>, #tpu.dimension_semantics<parallel>], iteration_bounds = array<i64: 2, 1>, scalar_prefetch = 0 : i64, scratch_operands = 0 : i64, tpu.core_type = #tpu.core_type<tc>, window_params = [{transform_indices = @transform_0, window_bounds = array<i64: 1, 8, 32>}, {transform_indices = @transform_1, window_bounds = array<i64: 1, 4, 8, 8>}, {transform_indices = @transform_2, window_bounds = array<i64: 1, 4, 8, 8>}, {transform_indices = @transform_3, window_bounds = array<i64: 1, 4, 8, 8>}, {pipeline_mode = #tpu.pipeline_mode<synchronous>, transform_indices = @transform_4, window_bounds = array<i64: 32, 32>}, {pipeline_mode = #tpu.pipeline_mode<synchronous>, transform_indices = @transform_5, window_bounds = array<i64: 1, 32>}, {pipeline_mode = #tpu.pipeline_mode<synchronous>, transform_indices = @transform_6, window_bounds = array<i64: 1, 32>}, {pipeline_mode = #tpu.pipeline_mode<synchronous>, transform_indices = @transform_7, window_bounds = array<i64: 32, 64>}, {pipeline_mode = #tpu.pipeline_mode<synchronous>, transform_indices = @transform_8, window_bounds = array<i64: 1, 64>}, {pipeline_mode = #tpu.pipeline_mode<synchronous>, transform_indices = @transform_9, window_bounds = array<i64: 64, 32>}, {pipeline_mode = #tpu.pipeline_mode<synchronous>, transform_indices = @transform_10, window_bounds = array<i64: 1, 32>}, {pipeline_mode = #tpu.pipeline_mode<synchronous>, transform_indices = @transform_11, window_bounds = array<i64: 1, 32>}, {pipeline_mode = #tpu.pipeline_mode<synchronous>, transform_indices = @transform_12, window_bounds = array<i64: 1, 32>}, {transform_indices = @transform_13, window_bounds = array<i64: 1, 8, 32>}, {transform_indices = @transform_14, window_bounds = array<i64: 1, 4, 8, 8>}]} {
    %c0 = arith.constant 0 : index
    %c0_0 = arith.constant 0 : index
    %c0_1 = arith.constant 0 : index
    %0 = vector.load %arg2[%c0, %c0_0, %c0_1] : memref<1x8x32xf32, #tpu.memory_space<vmem>>, vector<1x8x32xf32>
    %1 = vector.shape_cast %0 : vector<1x8x32xf32> to vector<8x32xf32>
    %c0_2 = arith.constant 0 : index
    %c0_3 = arith.constant 0 : index
    %c0_4 = arith.constant 0 : index
    %c0_5 = arith.constant 0 : index
    %2 = vector.load %arg3[%c0_2, %c0_3, %c0_4, %c0_5] : memref<1x4x8x8xf32, #tpu.memory_space<vmem>>, vector<1x4x8x8xf32>
    %3 = vector.shape_cast %2 : vector<1x4x8x8xf32> to vector<4x8x8xf32>
    %c0_6 = arith.constant 0 : index
    %c0_7 = arith.constant 0 : index
    %c0_8 = arith.constant 0 : index
    %c0_9 = arith.constant 0 : index
    %4 = vector.load %arg4[%c0_6, %c0_7, %c0_8, %c0_9] : memref<1x4x8x8xf32, #tpu.memory_space<vmem>>, vector<1x4x8x8xf32>
    %5 = vector.shape_cast %4 : vector<1x4x8x8xf32> to vector<4x8x8xf32>
    %c0_10 = arith.constant 0 : index
    %c0_11 = arith.constant 0 : index
    %c0_12 = arith.constant 0 : index
    %c0_13 = arith.constant 0 : index
    %6 = vector.load %arg5[%c0_10, %c0_11, %c0_12, %c0_13] : memref<1x4x8x8xf32, #tpu.memory_space<vmem>>, vector<1x4x8x8xf32>
    %7 = vector.shape_cast %6 : vector<1x4x8x8xf32> to vector<4x8x8xf32>
    "tpu.trace_start"() <{level = 10 : i32, message = "hqd,hkd->hqk"}> : () -> ()
    %cst = arith.constant dense<0.000000e+00> : vector<4x8x8xf32>
    %8 = tpu.matmul %3, %5, %cst {dimension_numbers = #tpu.dot_dimension_numbers<[2], [2], [1], [1], [0, 0, 0, 1, 1, 1], [0], [0]>} : vector<4x8x8xf32>, vector<4x8x8xf32>, vector<4x8x8xf32> -> vector<4x8x8xf32>
    "tpu.trace_stop"() : () -> ()
    %cst_14 = arith.constant 0.176776692 : f32
    %9 = vector.broadcast %cst_14 : f32 to vector<4x8x8xf32>
    %10 = arith.mulf %8, %9 : vector<4x8x8xf32>
    %cst_15 = arith.constant dense<0xFF800000> : vector<4x8xf32>
    %11 = vector.multi_reduction <maximumf>, %10, %cst_15 [2] : vector<4x8x8xf32> to vector<4x8xf32>
    %12 = vector.shape_cast %11 : vector<4x8xf32> to vector<4x8x1xf32>
    %13 = vector.broadcast %12 : vector<4x8x1xf32> to vector<4x8x8xf32>
    %14 = arith.subf %10, %13 : vector<4x8x8xf32>
    %15 = math.exp %14 : vector<4x8x8xf32>
    %cst_16 = arith.constant dense<0.000000e+00> : vector<4x8xf32>
    %16 = vector.multi_reduction <add>, %15, %cst_16 [2] : vector<4x8x8xf32> to vector<4x8xf32>
    %17 = vector.shape_cast %16 : vector<4x8xf32> to vector<4x8x1xf32>
    %18 = tpu.reciprocal %17 {approx = true} : vector<4x8x1xf32> -> vector<4x8x1xf32>
    %19 = vector.broadcast %18 : vector<4x8x1xf32> to vector<4x8x8xf32>
    %20 = arith.mulf %15, %19 : vector<4x8x8xf32>
    %c0_17 = arith.constant 0 : index
    %c0_18 = arith.constant 0 : index
    %c0_19 = arith.constant 0 : index
    %c0_20 = arith.constant 0 : index
    %21 = vector.load %arg16[%c0_17, %c0_18, %c0_19, %c0_20] : memref<1x4x8x8xf32, #tpu.memory_space<vmem>>, vector<1x4x8x8xf32>
    %22 = vector.shape_cast %21 : vector<1x4x8x8xf32> to vector<4x8x8xf32>
    %23 = vector.shape_cast %20 : vector<4x8x8xf32> to vector<1x4x8x8xf32>
    tpu.vector_store %arg16[%c0_17, %c0_18, %c0_19, %c0_20], %23 {strides = array<i32>} : memref<1x4x8x8xf32, #tpu.memory_space<vmem>>, vector<1x4x8x8xf32>,
    "tpu.trace_start"() <{level = 10 : i32, message = "hqk,hkd->hqd"}> : () -> ()
    %cst_21 = arith.constant dense<0.000000e+00> : vector<4x8x8xf32>
    %24 = tpu.matmul %20, %7, %cst_21 {dimension_numbers = #tpu.dot_dimension_numbers<[2], [1], [1], [2], [0, 0, 0, 1, 1, 2], [0], [0]>} : vector<4x8x8xf32>, vector<4x8x8xf32>, vector<4x8x8xf32> -> vector<4x8x8xf32>
    "tpu.trace_stop"() : () -> ()
    %25 = vector.extract_strided_slice %24 {offsets = [0, 0, 0], sizes = [1, 8, 8], strides = [1, 1, 1]} : vector<4x8x8xf32> to vector<1x8x8xf32>
    %26 = vector.shape_cast %25 : vector<1x8x8xf32> to vector<8x8xf32>
    %27 = vector.extract_strided_slice %24 {offsets = [1, 0, 0], sizes = [1, 8, 8], strides = [1, 1, 1]} : vector<4x8x8xf32> to vector<1x8x8xf32>
    %28 = vector.shape_cast %27 : vector<1x8x8xf32> to vector<8x8xf32>
    %29 = vector.extract_strided_slice %24 {offsets = [2, 0, 0], sizes = [1, 8, 8], strides = [1, 1, 1]} : vector<4x8x8xf32> to vector<1x8x8xf32>
    %30 = vector.shape_cast %29 : vector<1x8x8xf32> to vector<8x8xf32>
    %31 = vector.extract_strided_slice %24 {offsets = [3, 0, 0], sizes = [1, 8, 8], strides = [1, 1, 1]} : vector<4x8x8xf32> to vector<1x8x8xf32>
    %32 = vector.shape_cast %31 : vector<1x8x8xf32> to vector<8x8xf32>
    %33 = tpu.concatenate %26, %28, %30, %32 in 1 : vector<8x8xf32>, vector<8x8xf32>, vector<8x8xf32>, vector<8x8xf32> -> vector<8x32xf32>
    %c0_22 = arith.constant 0 : index
    %c0_23 = arith.constant 0 : index
    %34 = vector.load %arg6[%c0_22, %c0_23] : memref<32x32xf32, #tpu.memory_space<vmem>>, vector<32x32xf32>
    %cst_24 = arith.constant dense<0.000000e+00> : vector<8x32xf32>
    %35 = tpu.matmul %33, %34, %cst_24 {dimension_numbers = #tpu.dot_dimension_numbers<[1], [0], [0], [1], [0, 0, 1, 1], [], []>} : vector<8x32xf32>, vector<32x32xf32>, vector<8x32xf32> -> vector<8x32xf32>
    %36 = arith.addf %35, %1 : vector<8x32xf32>
    %c0_25 = arith.constant 0 : index
    %c0_26 = arith.constant 0 : index
    %37 = vector.load %arg7[%c0_25, %c0_26] : memref<1x32xf32, #tpu.memory_space<vmem>>, vector<1x32xf32>
    %38 = vector.shape_cast %37 : vector<1x32xf32> to vector<32xf32>
    %c0_27 = arith.constant 0 : index
    %c0_28 = arith.constant 0 : index
    %39 = vector.load %arg8[%c0_27, %c0_28] : memref<1x32xf32, #tpu.memory_space<vmem>>, vector<1x32xf32>
    %40 = vector.shape_cast %39 : vector<1x32xf32> to vector<32xf32>
    %cst_29 = arith.constant dense<0.000000e+00> : vector<8xf32>
    %41 = vector.multi_reduction <add>, %36, %cst_29 [1] : vector<8x32xf32> to vector<8xf32>
    %42 = vector.shape_cast %41 : vector<8xf32> to vector<8x1xf32>
    %cst_30 = arith.constant 3.200000e+01 : f32
    %43 = vector.broadcast %cst_30 : f32 to vector<8x1xf32>
    %44 = arith.divf %42, %43 : vector<8x1xf32>
    %45 = vector.broadcast %44 : vector<8x1xf32> to vector<8x32xf32>
    %46 = arith.subf %36, %45 : vector<8x32xf32>
    %47 = arith.mulf %46, %46 : vector<8x32xf32>
    %cst_31 = arith.constant dense<0.000000e+00> : vector<8xf32>
    %48 = vector.multi_reduction <add>, %47, %cst_31 [1] : vector<8x32xf32> to vector<8xf32>
    %49 = vector.shape_cast %48 : vector<8xf32> to vector<8x1xf32>
    %cst_32 = arith.constant 3.200000e+01 : f32
    %50 = vector.broadcast %cst_32 : f32 to vector<8x1xf32>
    %51 = arith.divf %49, %50 : vector<8x1xf32>
    %cst_33 = arith.constant 9.99999974E-6 : f32
    %52 = vector.broadcast %cst_33 : f32 to vector<8x1xf32>
    %53 = arith.addf %51, %52 : vector<8x1xf32>
    %54 = math.rsqrt %53 : vector<8x1xf32>
    %55 = vector.broadcast %54 : vector<8x1xf32> to vector<8x32xf32>
    %56 = arith.mulf %46, %55 : vector<8x32xf32>
    %57 = vector.shape_cast %38 : vector<32xf32> to vector<1x32xf32>
    %58 = vector.broadcast %57 : vector<1x32xf32> to vector<8x32xf32>
    %59 = arith.mulf %56, %58 : vector<8x32xf32>
    %60 = vector.shape_cast %40 : vector<32xf32> to vector<1x32xf32>
    %61 = vector.broadcast %60 : vector<1x32xf32> to vector<8x32xf32>
    %62 = arith.addf %59, %61 : vector<8x32xf32>
    %c0_34 = arith.constant 0 : index
    %c0_35 = arith.constant 0 : index
    %63 = vector.load %arg9[%c0_34, %c0_35] : memref<32x64xf32, #tpu.memory_space<vmem>>, vector<32x64xf32>
    %cst_36 = arith.constant dense<0.000000e+00> : vector<8x64xf32>
    %64 = tpu.matmul %62, %63, %cst_36 {dimension_numbers = #tpu.dot_dimension_numbers<[1], [0], [0], [1], [0, 0, 1, 1], [], []>} : vector<8x32xf32>, vector<32x64xf32>, vector<8x64xf32> -> vector<8x64xf32>
    %c0_37 = arith.constant 0 : index
    %c0_38 = arith.constant 0 : index
    %65 = vector.load %arg10[%c0_37, %c0_38] : memref<1x64xf32, #tpu.memory_space<vmem>>, vector<1x64xf32>
    %66 = vector.shape_cast %65 : vector<1x64xf32> to vector<64xf32>
    %67 = vector.shape_cast %66 : vector<64xf32> to vector<1x64xf32>
    %68 = vector.broadcast %67 : vector<1x64xf32> to vector<8x64xf32>
    %69 = arith.addf %64, %68 : vector<8x64xf32>
    %cst_39 = arith.constant 0.000000e+00 : f32
    %70 = vector.broadcast %cst_39 : f32 to vector<8x64xf32>
    %71 = arith.maximumf %69, %70 : vector<8x64xf32>
    %c0_40 = arith.constant 0 : index
    %c0_41 = arith.constant 0 : index
    %72 = vector.load %arg11[%c0_40, %c0_41] : memref<64x32xf32, #tpu.memory_space<vmem>>, vector<64x32xf32>
    %cst_42 = arith.constant dense<0.000000e+00> : vector<8x32xf32>
    %73 = tpu.matmul %71, %72, %cst_42 {dimension_numbers = #tpu.dot_dimension_numbers<[1], [0], [0], [1], [0, 0, 1, 1], [], []>} : vector<8x64xf32>, vector<64x32xf32>, vector<8x32xf32> -> vector<8x32xf32>
    %c0_43 = arith.constant 0 : index
    %c0_44 = arith.constant 0 : index
    %74 = vector.load %arg12[%c0_43, %c0_44] : memref<1x32xf32, #tpu.memory_space<vmem>>, vector<1x32xf32>
    %75 = vector.shape_cast %74 : vector<1x32xf32> to vector<32xf32>
    %76 = vector.shape_cast %75 : vector<32xf32> to vector<1x32xf32>
    %77 = vector.broadcast %76 : vector<1x32xf32> to vector<8x32xf32>
    %78 = arith.addf %73, %77 : vector<8x32xf32>
    %79 = arith.addf %78, %62 : vector<8x32xf32>
    %c0_45 = arith.constant 0 : index
    %c0_46 = arith.constant 0 : index
    %80 = vector.load %arg13[%c0_45, %c0_46] : memref<1x32xf32, #tpu.memory_space<vmem>>, vector<1x32xf32>
    %81 = vector.shape_cast %80 : vector<1x32xf32> to vector<32xf32>
    %c0_47 = arith.constant 0 : index
    %c0_48 = arith.constant 0 : index
    %82 = vector.load %arg14[%c0_47, %c0_48] : memref<1x32xf32, #tpu.memory_space<vmem>>, vector<1x32xf32>
    %83 = vector.shape_cast %82 : vector<1x32xf32> to vector<32xf32>
    %cst_49 = arith.constant dense<0.000000e+00> : vector<8xf32>
    %84 = vector.multi_reduction <add>, %79, %cst_49 [1] : vector<8x32xf32> to vector<8xf32>
    %85 = vector.shape_cast %84 : vector<8xf32> to vector<8x1xf32>
    %cst_50 = arith.constant 3.200000e+01 : f32
    %86 = vector.broadcast %cst_50 : f32 to vector<8x1xf32>
    %87 = arith.divf %85, %86 : vector<8x1xf32>
    %88 = vector.broadcast %87 : vector<8x1xf32> to vector<8x32xf32>
    %89 = arith.subf %79, %88 : vector<8x32xf32>
    %90 = arith.mulf %89, %89 : vector<8x32xf32>
    %cst_51 = arith.constant dense<0.000000e+00> : vector<8xf32>
    %91 = vector.multi_reduction <add>, %90, %cst_51 [1] : vector<8x32xf32> to vector<8xf32>
    %92 = vector.shape_cast %91 : vector<8xf32> to vector<8x1xf32>
    %cst_52 = arith.constant 3.200000e+01 : f32
    %93 = vector.broadcast %cst_52 : f32 to vector<8x1xf32>
    %94 = arith.divf %92, %93 : vector<8x1xf32>
    %cst_53 = arith.constant 9.99999974E-6 : f32
    %95 = vector.broadcast %cst_53 : f32 to vector<8x1xf32>
    %96 = arith.addf %94, %95 : vector<8x1xf32>
    %97 = math.rsqrt %96 : vector<8x1xf32>
    %98 = vector.broadcast %97 : vector<8x1xf32> to vector<8x32xf32>
    %99 = arith.mulf %89, %98 : vector<8x32xf32>
    %100 = vector.shape_cast %81 : vector<32xf32> to vector<1x32xf32>
    %101 = vector.broadcast %100 : vector<1x32xf32> to vector<8x32xf32>
    %102 = arith.mulf %99, %101 : vector<8x32xf32>
    %103 = vector.shape_cast %83 : vector<32xf32> to vector<1x32xf32>
    %104 = vector.broadcast %103 : vector<1x32xf32> to vector<8x32xf32>
    %105 = arith.addf %102, %104 : vector<8x32xf32>
    %c0_54 = arith.constant 0 : index
    %c0_55 = arith.constant 0 : index
    %c0_56 = arith.constant 0 : index
    %106 = vector.load %arg15[%c0_54, %c0_55, %c0_56] : memref<1x8x32xf32, #tpu.memory_space<vmem>>, vector<1x8x32xf32>
    %107 = vector.shape_cast %106 : vector<1x8x32xf32> to vector<8x32xf32>
    %108 = vector.shape_cast %105 : vector<8x32xf32> to vector<1x8x32xf32>
    tpu.vector_store %arg15[%c0_54, %c0_55, %c0_56], %108 {strides = array<i32>} : memref<1x8x32xf32, #tpu.memory_space<vmem>>, vector<1x8x32xf32>,
    return
  }
  func.func @transform_0(%arg0: i32, %arg1: i32) -> (i32, i32, i32) {
    %c0_i32 = arith.constant 0 : i32
    %c0_i32_0 = arith.constant 0 : i32
    return %arg0, %arg1, %c0_i32 : i32, i32, i32
  }
  func.func @transform_1(%arg0: i32, %arg1: i32) -> (i32, i32, i32, i32) {
    %c0_i32 = arith.constant 0 : i32
    %c0_i32_0 = arith.constant 0 : i32
    %c0_i32_1 = arith.constant 0 : i32
    return %arg0, %c0_i32, %arg1, %c0_i32_0 : i32, i32, i32, i32
  }
  func.func @transform_2(%arg0: i32, %arg1: i32) -> (i32, i32, i32, i32) {
    %c0_i32 = arith.constant 0 : i32
    %c0_i32_0 = arith.constant 0 : i32
    %c0_i32_1 = arith.constant 0 : i32
    %c0_i32_2 = arith.constant 0 : i32
    return %arg0, %c0_i32, %c0_i32_0, %c0_i32_1 : i32, i32, i32, i32
  }
  func.func @transform_3(%arg0: i32, %arg1: i32) -> (i32, i32, i32, i32) {
    %c0_i32 = arith.constant 0 : i32
    %c0_i32_0 = arith.constant 0 : i32
    %c0_i32_1 = arith.constant 0 : i32
    %c0_i32_2 = arith.constant 0 : i32
    return %arg0, %c0_i32, %c0_i32_0, %c0_i32_1 : i32, i32, i32, i32
  }
  func.func @transform_4(%arg0: i32, %arg1: i32) -> (i32, i32) {
    %c0_i32 = arith.constant 0 : i32
    %c0_i32_0 = arith.constant 0 : i32
    %c0_i32_1 = arith.constant 0 : i32
    return %c0_i32, %c0_i32_0 : i32, i32
  }
  func.func @transform_5(%arg0: i32, %arg1: i32) -> (i32, i32) {
    %c0_i32 = arith.constant 0 : i32
    %c0_i32_0 = arith.constant 0 : i32
    %c0_i32_1 = arith.constant 0 : i32
    return %c0_i32, %c0_i32_0 : i32, i32
  }
  func.func @transform_6(%arg0: i32, %arg1: i32) -> (i32, i32) {
    %c0_i32 = arith.constant 0 : i32
    %c0_i32_0 = arith.constant 0 : i32
    %c0_i32_1 = arith.constant 0 : i32
    return %c0_i32, %c0_i32_0 : i32, i32
  }
  func.func @transform_7(%arg0: i32, %arg1: i32) -> (i32, i32) {
    %c0_i32 = arith.constant 0 : i32
    %c0_i32_0 = arith.constant 0 : i32
    %c0_i32_1 = arith.constant 0 : i32
    return %c0_i32, %c0_i32_0 : i32, i32
  }
  func.func @transform_8(%arg0: i32, %arg1: i32) -> (i32, i32) {
    %c0_i32 = arith.constant 0 : i32
    %c0_i32_0 = arith.constant 0 : i32
    %c0_i32_1 = arith.constant 0 : i32
    return %c0_i32, %c0_i32_0 : i32, i32
  }
  func.func @transform_9(%arg0: i32, %arg1: i32) -> (i32, i32) {
    %c0_i32 = arith.constant 0 : i32
    %c0_i32_0 = arith.constant 0 : i32
    %c0_i32_1 = arith.constant 0 : i32
    return %c0_i32, %c0_i32_0 : i32, i32
  }
  func.func @transform_10(%arg0: i32, %arg1: i32) -> (i32, i32) {
    %c0_i32 = arith.constant 0 : i32
    %c0_i32_0 = arith.constant 0 : i32
    %c0_i32_1 = arith.constant 0 : i32
    return %c0_i32, %c0_i32_0 : i32, i32
  }
  func.func @transform_11(%arg0: i32, %arg1: i32) -> (i32, i32) {
    %c0_i32 = arith.constant 0 : i32
    %c0_i32_0 = arith.constant 0 : i32
    %c0_i32_1 = arith.constant 0 : i32
    return %c0_i32, %c0_i32_0 : i32, i32
  }
  func.func @transform_12(%arg0: i32, %arg1: i32) -> (i32, i32) {
    %c0_i32 = arith.constant 0 : i32
    %c0_i32_0 = arith.constant 0 : i32
    %c0_i32_1 = arith.constant 0 : i32
    return %c0_i32, %c0_i32_0 : i32, i32
  }
  func.func @transform_13(%arg0: i32, %arg1: i32) -> (i32, i32, i32) {
    %c0_i32 = arith.constant 0 : i32
    %c0_i32_0 = arith.constant 0 : i32
    return %arg0, %arg1, %c0_i32 : i32, i32, i32
  }
  func.func @transform_14(%arg0: i32, %arg1: i32) -> (i32, i32, i32, i32) {
    %c0_i32 = arith.constant 0 : i32
    %c0_i32_0 = arith.constant 0 : i32
    %c0_i32_1 = arith.constant 0 : i32
    return %arg0, %c0_i32, %arg1, %c0_i32_0 : i32, i32, i32, i32
  }
}

module attributes {stable_mosaic.version = 11 : i64} {
  func.func @_qkv_proj_kernel(%arg0: i32, %arg1: i32, %arg2: memref<1x8x32xf32, #tpu.memory_space<vmem>>, %arg3: memref<32x96xf32, #tpu.memory_space<vmem>>, %arg4: memref<1x4x8x8xf32, #tpu.memory_space<vmem>>, %arg5: memref<1x4x8x8xf32, #tpu.memory_space<vmem>>, %arg6: memref<1x4x8x8xf32, #tpu.memory_space<vmem>>) attributes {dimension_semantics = [#tpu.dimension_semantics<parallel>, #tpu.dimension_semantics<parallel>], iteration_bounds = array<i64: 2, 1>, scalar_prefetch = 0 : i64, scratch_operands = 0 : i64, tpu.core_type = #tpu.core_type<tc>, window_params = [{transform_indices = @transform_0, window_bounds = array<i64: 1, 8, 32>}, {pipeline_mode = #tpu.pipeline_mode<synchronous>, transform_indices = @transform_1, window_bounds = array<i64: 32, 96>}, {transform_indices = @transform_2, window_bounds = array<i64: 1, 4, 8, 8>}, {transform_indices = @transform_3, window_bounds = array<i64: 1, 4, 8, 8>}, {transform_indices = @transform_4, window_bounds = array<i64: 1, 4, 8, 8>}]} {
    %c0 = arith.constant 0 : index
    %c0_0 = arith.constant 0 : index
    %c0_1 = arith.constant 0 : index
    %0 = vector.load %arg2[%c0, %c0_0, %c0_1] : memref<1x8x32xf32, #tpu.memory_space<vmem>>, vector<1x8x32xf32>
    %1 = vector.shape_cast %0 : vector<1x8x32xf32> to vector<8x32xf32>
    %c0_2 = arith.constant 0 : index
    %c0_3 = arith.constant 0 : index
    %2 = vector.load %arg3[%c0_2, %c0_3] : memref<32x96xf32, #tpu.memory_space<vmem>>, vector<32x96xf32>
    %cst = arith.constant dense<0.000000e+00> : vector<8x96xf32>
    %3 = tpu.matmul %1, %2, %cst {dimension_numbers = #tpu.dot_dimension_numbers<[1], [0], [0], [1], [0, 0, 1, 1], [], []>} : vector<8x32xf32>, vector<32x96xf32>, vector<8x96xf32> -> vector<8x96xf32>
    %4 = vector.extract_strided_slice %3 {offsets = [0, 0], sizes = [8, 8], strides = [1, 1]} : vector<8x96xf32> to vector<8x8xf32>
    %c0_4 = arith.constant 0 : index
    %c0_5 = arith.constant 0 : index
    %c0_6 = arith.constant 0 : index
    %c0_7 = arith.constant 0 : index
    %5 = vector.load %arg4[%c0_4, %c0_5, %c0_6, %c0_7] : memref<1x4x8x8xf32, #tpu.memory_space<vmem>>, vector<1x1x8x8xf32>
    %6 = vector.shape_cast %5 : vector<1x1x8x8xf32> to vector<8x8xf32>
    %7 = vector.shape_cast %4 : vector<8x8xf32> to vector<1x1x8x8xf32>
    tpu.vector_store %arg4[%c0_4, %c0_5, %c0_6, %c0_7], %7 {strides = array<i32>} : memref<1x4x8x8xf32, #tpu.memory_space<vmem>>, vector<1x1x8x8xf32>,
    %8 = vector.extract_strided_slice %3 {offsets = [0, 32], sizes = [8, 8], strides = [1, 1]} : vector<8x96xf32> to vector<8x8xf32>
    %c0_8 = arith.constant 0 : index
    %c0_9 = arith.constant 0 : index
    %c0_10 = arith.constant 0 : index
    %c0_11 = arith.constant 0 : index
    %9 = vector.load %arg5[%c0_8, %c0_9, %c0_10, %c0_11] : memref<1x4x8x8xf32, #tpu.memory_space<vmem>>, vector<1x1x8x8xf32>
    %10 = vector.shape_cast %9 : vector<1x1x8x8xf32> to vector<8x8xf32>
    %11 = vector.shape_cast %8 : vector<8x8xf32> to vector<1x1x8x8xf32>
    tpu.vector_store %arg5[%c0_8, %c0_9, %c0_10, %c0_11], %11 {strides = array<i32>} : memref<1x4x8x8xf32, #tpu.memory_space<vmem>>, vector<1x1x8x8xf32>,
    %12 = vector.extract_strided_slice %3 {offsets = [0, 64], sizes = [8, 8], strides = [1, 1]} : vector<8x96xf32> to vector<8x8xf32>
    %c0_12 = arith.constant 0 : index
    %c0_13 = arith.constant 0 : index
    %c0_14 = arith.constant 0 : index
    %c0_15 = arith.constant 0 : index
    %13 = vector.load %arg6[%c0_12, %c0_13, %c0_14, %c0_15] : memref<1x4x8x8xf32, #tpu.memory_space<vmem>>, vector<1x1x8x8xf32>
    %14 = vector.shape_cast %13 : vector<1x1x8x8xf32> to vector<8x8xf32>
    %15 = vector.shape_cast %12 : vector<8x8xf32> to vector<1x1x8x8xf32>
    tpu.vector_store %arg6[%c0_12, %c0_13, %c0_14, %c0_15], %15 {strides = array<i32>} : memref<1x4x8x8xf32, #tpu.memory_space<vmem>>, vector<1x1x8x8xf32>,
    %16 = vector.extract_strided_slice %3 {offsets = [0, 8], sizes = [8, 8], strides = [1, 1]} : vector<8x96xf32> to vector<8x8xf32>
    %c0_16 = arith.constant 0 : index
    %c1 = arith.constant 1 : index
    %c0_17 = arith.constant 0 : index
    %c0_18 = arith.constant 0 : index
    %17 = vector.load %arg4[%c0_16, %c1, %c0_17, %c0_18] : memref<1x4x8x8xf32, #tpu.memory_space<vmem>>, vector<1x1x8x8xf32>
    %18 = vector.shape_cast %17 : vector<1x1x8x8xf32> to vector<8x8xf32>
    %19 = vector.shape_cast %16 : vector<8x8xf32> to vector<1x1x8x8xf32>
    tpu.vector_store %arg4[%c0_16, %c1, %c0_17, %c0_18], %19 {strides = array<i32>} : memref<1x4x8x8xf32, #tpu.memory_space<vmem>>, vector<1x1x8x8xf32>,
    %20 = vector.extract_strided_slice %3 {offsets = [0, 40], sizes = [8, 8], strides = [1, 1]} : vector<8x96xf32> to vector<8x8xf32>
    %c0_19 = arith.constant 0 : index
    %c1_20 = arith.constant 1 : index
    %c0_21 = arith.constant 0 : index
    %c0_22 = arith.constant 0 : index
    %21 = vector.load %arg5[%c0_19, %c1_20, %c0_21, %c0_22] : memref<1x4x8x8xf32, #tpu.memory_space<vmem>>, vector<1x1x8x8xf32>
    %22 = vector.shape_cast %21 : vector<1x1x8x8xf32> to vector<8x8xf32>
    %23 = vector.shape_cast %20 : vector<8x8xf32> to vector<1x1x8x8xf32>
    tpu.vector_store %arg5[%c0_19, %c1_20, %c0_21, %c0_22], %23 {strides = array<i32>} : memref<1x4x8x8xf32, #tpu.memory_space<vmem>>, vector<1x1x8x8xf32>,
    %24 = vector.extract_strided_slice %3 {offsets = [0, 72], sizes = [8, 8], strides = [1, 1]} : vector<8x96xf32> to vector<8x8xf32>
    %c0_23 = arith.constant 0 : index
    %c1_24 = arith.constant 1 : index
    %c0_25 = arith.constant 0 : index
    %c0_26 = arith.constant 0 : index
    %25 = vector.load %arg6[%c0_23, %c1_24, %c0_25, %c0_26] : memref<1x4x8x8xf32, #tpu.memory_space<vmem>>, vector<1x1x8x8xf32>
    %26 = vector.shape_cast %25 : vector<1x1x8x8xf32> to vector<8x8xf32>
    %27 = vector.shape_cast %24 : vector<8x8xf32> to vector<1x1x8x8xf32>
    tpu.vector_store %arg6[%c0_23, %c1_24, %c0_25, %c0_26], %27 {strides = array<i32>} : memref<1x4x8x8xf32, #tpu.memory_space<vmem>>, vector<1x1x8x8xf32>,
    %28 = vector.extract_strided_slice %3 {offsets = [0, 16], sizes = [8, 8], strides = [1, 1]} : vector<8x96xf32> to vector<8x8xf32>
    %c0_27 = arith.constant 0 : index
    %c2 = arith.constant 2 : index
    %c0_28 = arith.constant 0 : index
    %c0_29 = arith.constant 0 : index
    %29 = vector.load %arg4[%c0_27, %c2, %c0_28, %c0_29] : memref<1x4x8x8xf32, #tpu.memory_space<vmem>>, vector<1x1x8x8xf32>
    %30 = vector.shape_cast %29 : vector<1x1x8x8xf32> to vector<8x8xf32>
    %31 = vector.shape_cast %28 : vector<8x8xf32> to vector<1x1x8x8xf32>
    tpu.vector_store %arg4[%c0_27, %c2, %c0_28, %c0_29], %31 {strides = array<i32>} : memref<1x4x8x8xf32, #tpu.memory_space<vmem>>, vector<1x1x8x8xf32>,
    %32 = vector.extract_strided_slice %3 {offsets = [0, 48], sizes = [8, 8], strides = [1, 1]} : vector<8x96xf32> to vector<8x8xf32>
    %c0_30 = arith.constant 0 : index
    %c2_31 = arith.constant 2 : index
    %c0_32 = arith.constant 0 : index
    %c0_33 = arith.constant 0 : index
    %33 = vector.load %arg5[%c0_30, %c2_31, %c0_32, %c0_33] : memref<1x4x8x8xf32, #tpu.memory_space<vmem>>, vector<1x1x8x8xf32>
    %34 = vector.shape_cast %33 : vector<1x1x8x8xf32> to vector<8x8xf32>
    %35 = vector.shape_cast %32 : vector<8x8xf32> to vector<1x1x8x8xf32>
    tpu.vector_store %arg5[%c0_30, %c2_31, %c0_32, %c0_33], %35 {strides = array<i32>} : memref<1x4x8x8xf32, #tpu.memory_space<vmem>>, vector<1x1x8x8xf32>,
    %36 = vector.extract_strided_slice %3 {offsets = [0, 80], sizes = [8, 8], strides = [1, 1]} : vector<8x96xf32> to vector<8x8xf32>
    %c0_34 = arith.constant 0 : index
    %c2_35 = arith.constant 2 : index
    %c0_36 = arith.constant 0 : index
    %c0_37 = arith.constant 0 : index
    %37 = vector.load %arg6[%c0_34, %c2_35, %c0_36, %c0_37] : memref<1x4x8x8xf32, #tpu.memory_space<vmem>>, vector<1x1x8x8xf32>
    %38 = vector.shape_cast %37 : vector<1x1x8x8xf32> to vector<8x8xf32>
    %39 = vector.shape_cast %36 : vector<8x8xf32> to vector<1x1x8x8xf32>
    tpu.vector_store %arg6[%c0_34, %c2_35, %c0_36, %c0_37], %39 {strides = array<i32>} : memref<1x4x8x8xf32, #tpu.memory_space<vmem>>, vector<1x1x8x8xf32>,
    %40 = vector.extract_strided_slice %3 {offsets = [0, 24], sizes = [8, 8], strides = [1, 1]} : vector<8x96xf32> to vector<8x8xf32>
    %c0_38 = arith.constant 0 : index
    %c3 = arith.constant 3 : index
    %c0_39 = arith.constant 0 : index
    %c0_40 = arith.constant 0 : index
    %41 = vector.load %arg4[%c0_38, %c3, %c0_39, %c0_40] : memref<1x4x8x8xf32, #tpu.memory_space<vmem>>, vector<1x1x8x8xf32>
    %42 = vector.shape_cast %41 : vector<1x1x8x8xf32> to vector<8x8xf32>
    %43 = vector.shape_cast %40 : vector<8x8xf32> to vector<1x1x8x8xf32>
    tpu.vector_store %arg4[%c0_38, %c3, %c0_39, %c0_40], %43 {strides = array<i32>} : memref<1x4x8x8xf32, #tpu.memory_space<vmem>>, vector<1x1x8x8xf32>,
    %44 = vector.extract_strided_slice %3 {offsets = [0, 56], sizes = [8, 8], strides = [1, 1]} : vector<8x96xf32> to vector<8x8xf32>
    %c0_41 = arith.constant 0 : index
    %c3_42 = arith.constant 3 : index
    %c0_43 = arith.constant 0 : index
    %c0_44 = arith.constant 0 : index
    %45 = vector.load %arg5[%c0_41, %c3_42, %c0_43, %c0_44] : memref<1x4x8x8xf32, #tpu.memory_space<vmem>>, vector<1x1x8x8xf32>
    %46 = vector.shape_cast %45 : vector<1x1x8x8xf32> to vector<8x8xf32>
    %47 = vector.shape_cast %44 : vector<8x8xf32> to vector<1x1x8x8xf32>
    tpu.vector_store %arg5[%c0_41, %c3_42, %c0_43, %c0_44], %47 {strides = array<i32>} : memref<1x4x8x8xf32, #tpu.memory_space<vmem>>, vector<1x1x8x8xf32>,
    %48 = vector.extract_strided_slice %3 {offsets = [0, 88], sizes = [8, 8], strides = [1, 1]} : vector<8x96xf32> to vector<8x8xf32>
    %c0_45 = arith.constant 0 : index
    %c3_46 = arith.constant 3 : index
    %c0_47 = arith.constant 0 : index
    %c0_48 = arith.constant 0 : index
    %49 = vector.load %arg6[%c0_45, %c3_46, %c0_47, %c0_48] : memref<1x4x8x8xf32, #tpu.memory_space<vmem>>, vector<1x1x8x8xf32>
    %50 = vector.shape_cast %49 : vector<1x1x8x8xf32> to vector<8x8xf32>
    %51 = vector.shape_cast %48 : vector<8x8xf32> to vector<1x1x8x8xf32>
    tpu.vector_store %arg6[%c0_45, %c3_46, %c0_47, %c0_48], %51 {strides = array<i32>} : memref<1x4x8x8xf32, #tpu.memory_space<vmem>>, vector<1x1x8x8xf32>,
    return
  }
  func.func @transform_0(%arg0: i32, %arg1: i32) -> (i32, i32, i32) {
    %c0_i32 = arith.constant 0 : i32
    %c0_i32_0 = arith.constant 0 : i32
    return %arg0, %arg1, %c0_i32 : i32, i32, i32
  }
  func.func @transform_1(%arg0: i32, %arg1: i32) -> (i32, i32) {
    %c0_i32 = arith.constant 0 : i32
    %c0_i32_0 = arith.constant 0 : i32
    %c0_i32_1 = arith.constant 0 : i32
    return %c0_i32, %c0_i32_0 : i32, i32
  }
  func.func @transform_2(%arg0: i32, %arg1: i32) -> (i32, i32, i32, i32) {
    %c0_i32 = arith.constant 0 : i32
    %c0_i32_0 = arith.constant 0 : i32
    %c0_i32_1 = arith.constant 0 : i32
    return %arg0, %c0_i32, %arg1, %c0_i32_0 : i32, i32, i32, i32
  }
  func.func @transform_3(%arg0: i32, %arg1: i32) -> (i32, i32, i32, i32) {
    %c0_i32 = arith.constant 0 : i32
    %c0_i32_0 = arith.constant 0 : i32
    %c0_i32_1 = arith.constant 0 : i32
    return %arg0, %c0_i32, %arg1, %c0_i32_0 : i32, i32, i32, i32
  }
  func.func @transform_4(%arg0: i32, %arg1: i32) -> (i32, i32, i32, i32) {
    %c0_i32 = arith.constant 0 : i32
    %c0_i32_0 = arith.constant 0 : i32
    %c0_i32_1 = arith.constant 0 : i32
    return %arg0, %c0_i32, %arg1, %c0_i32_0 : i32, i32, i32, i32
  }
}

</mosaic_0001>

<llo_original>
// kernel: encoder_layer.2
$region0: #{encoder_layer.2}
  #allocation0 [shape = 'u32[]', space=smem, size = 0x4, offset = 0x4, fixed_abs, tag = 'smem constant byte address 0x4 - core index']
  #allocation1 [shape = 'u32[144,128]{1,0:T(1,128)}', space=vmem, size = 0x12000, scoped, tag = 'internal scratch']
  %s0 = inlined_call_operand.vmem [shape: f32[2,8,32], index: 0, kind: input, shape index: {}]
  %s1 = inlined_call_operand.vmem [shape: f32[32,96], index: 1, kind: input, shape index: {}]
  %s2 = inlined_call_operand.vmem [shape: f32[2,4,8,8], index: 2, kind: output, shape index: {0}]
  %s3 = inlined_call_operand.vmem [shape: f32[2,4,8,8], index: 3, kind: output, shape index: {1}]
  %s4 = inlined_call_operand.vmem [shape: f32[2,4,8,8], index: 4, kind: output, shape index: {2}]
  %5 = xla_tuple %s2, %s3, %s4
  %s6 = sld [smem:[#allocation0]]
  $region57: #{encoder_layer.2} parent=0
    _
  %s8 = ssub.s32 1, %s6
  %s9 = scalar_select 0, %s8, %s6
  loop: start=0, step=1, limit=4
  $region2: #{encoder_layer.2} parent=0 // loop_pre_header
    _
  $region3: #{encoder_layer.2} parent=0 // loop_header
    %s11 = sphi 0, %s15
    %p12 = scmp.ge.s32.totalorder %s11, 4
    %s18 = sphi 0, %s30
    %s19 = sphi 0, %s26
    %s20 = sphi 0, %s18
    %s21 = sphi 0, %s19
    %s22 = sphi 0, %s20
    %s23 = sphi 0, %s21
    %s35 = sphi 0, %s37
    %s38 = sphi 0, %s35
    %s39 = sphi 0, %s38
    %s55 = sphi 0, %s39
    %s59 = sphi 0, %s59
    %s61 = sphi 0, %s59
    %s62 = sphi 0, %s61
    %s76 = sphi 0, %s62
    %s84 = sphi 0, %s86
    %s87 = sphi 0, %s84
    %s88 = sphi 0, %s87
    %s104 = sphi 0, %s88
    %s112 = sphi 0, %s114
    %s115 = sphi 0, %s112
    %s116 = sphi 0, %s115
    %s132 = sphi 0, %s116
    %s140 = sphi 0, %s142
    %s143 = sphi 0, %s140
    %s144 = sphi 0, %s143
    %s160 = sphi 0, %s144
  $region4: #{encoder_layer.2} parent=0 // loop_header_branch
    %14 = sbr.rel (%p12) target = $region8
  $region5: #{encoder_layer.2} parent=0 // loop_body
    %s16 = ssub.s32 %s11, 1
    %s17 = ssub.s32 %s11, 2
    %s24 = sadd.s32 1, %s19
    %p25 = scmp.ge.s32.totalorder %s24, 1
    %s26 = scalar_select %p25, 0, %s24
    %s27 = sadd.s32 1, %s18
    %s28 = scalar_select %p25, %s27, %s18
    %p29 = scmp.ge.s32.totalorder %s28, 2
    %s30 = scalar_select %p29, 0, %s28
    %s31 = ssub.s32 %s18, %s30
    %s32 = ssub.s32 %s19, %s26
    %s33 = sor.u32 %s31, %s32
    %p34 = scmp.eq.s32.totalorder %s33, 0
    %s36 = sadd.s32 %s35, 1
    %s37 = scalar_select %p34, %s35, %s36
    %p40 = pneg %p34
    %p41 = scmp.eq.s32.totalorder %s11, 1
    %p42 = por %p40, %p41
    %p43 = scmp.ne.s32.totalorder %s35, %s38
    %p44 = scmp.eq.s32.totalorder %s11, 0
    %p45 = por %p43, %p44
    %p46 = scmp.ne.s32.totalorder %s35, %s38
    %p47 = scmp.eq.s32.totalorder %s16, 1
    %p48 = por %p46, %p47
    %p49 = scmp.ne.s32.totalorder %s38, %s39
    %p50 = scmp.eq.s32.totalorder %s16, 0
    %p51 = por %p49, %p50
    %p52 = scmp.ne.s32.totalorder %s38, %s39
    %p53 = scmp.eq.s32.totalorder %s17, 1
    %p54 = por %p52, %p53
    %p56 = scmp.ne.s32.totalorder %s39, %s55
    %p57 = scmp.eq.s32.totalorder %s17, 0
    %p58 = por %p56, %p57
    %s60 = sadd.s32 %s59, 1
    %p63 = scmp.eq.s32.totalorder %s11, 1
    %p64 = scmp.ne.s32.totalorder %s59, %s61
    %p65 = scmp.eq.s32.totalorder %s11, 0
    %p66 = por %p64, %p65
    %p67 = scmp.ne.s32.totalorder %s59, %s61
    %p68 = scmp.eq.s32.totalorder %s16, 1
    %p69 = por %p67, %p68
    %p70 = scmp.ne.s32.totalorder %s61, %s62
    %p71 = scmp.eq.s32.totalorder %s16, 0
    %p72 = por %p70, %p71
    %p73 = scmp.ne.s32.totalorder %s61, %s62
    %p74 = scmp.eq.s32.totalorder %s17, 1
    %p75 = por %p73, %p74
    %p77 = scmp.ne.s32.totalorder %s62, %s76
    %p78 = scmp.eq.s32.totalorder %s17, 0
    %p79 = por %p77, %p78
    %s80 = ssub.s32 %s18, %s30
    %s81 = ssub.s32 %s19, %s26
    %s82 = sor.u32 %s80, %s81
    %p83 = scmp.eq.s32.totalorder %s82, 0
    %s85 = sadd.s32 %s84, 1
    %s86 = scalar_select %p83, %s84, %s85
    %p89 = pneg %p83
    %p90 = scmp.eq.s32.totalorder %s11, 1
    %p91 = por %p89, %p90
    %p92 = scmp.ne.s32.totalorder %s84, %s87
    %p93 = scmp.eq.s32.totalorder %s11, 0
    %p94 = por %p92, %p93
    %p95 = scmp.ne.s32.totalorder %s84, %s87
    %p96 = scmp.eq.s32.totalorder %s16, 1
    %p97 = por %p95, %p96
    %p98 = scmp.ne.s32.totalorder %s87, %s88
    %p99 = scmp.eq.s32.totalorder %s16, 0
    %p100 = por %p98, %p99
    %p101 = scmp.ne.s32.totalorder %s87, %s88
    %p102 = scmp.eq.s32.totalorder %s17, 1
    %p103 = por %p101, %p102
    %p105 = scmp.ne.s32.totalorder %s88, %s104
    %p106 = scmp.eq.s32.totalorder %s17, 0
    %p107 = por %p105, %p106
    %s108 = ssub.s32 %s18, %s30
    %s109 = ssub.s32 %s19, %s26
    %s110 = sor.u32 %s108, %s109
    %p111 = scmp.eq.s32.totalorder %s110, 0
    %s113 = sadd.s32 %s112, 1
    %s114 = scalar_select %p111, %s112, %s113
    %p117 = pneg %p111
    %p118 = scmp.eq.s32.totalorder %s11, 1
    %p119 = por %p117, %p118
    %p120 = scmp.ne.s32.totalorder %s112, %s115
    %p121 = scmp.eq.s32.totalorder %s11, 0
    %p122 = por %p120, %p121
    %p123 = scmp.ne.s32.totalorder %s112, %s115
    %p124 = scmp.eq.s32.totalorder %s16, 1
    %p125 = por %p123, %p124
    %p126 = scmp.ne.s32.totalorder %s115, %s116
    %p127 = scmp.eq.s32.totalorder %s16, 0
    %p128 = por %p126, %p127
    %p129 = scmp.ne.s32.totalorder %s115, %s116
    %p130 = scmp.eq.s32.totalorder %s17, 1
    %p131 = por %p129, %p130
    %p133 = scmp.ne.s32.totalorder %s116, %s132
    %p134 = scmp.eq.s32.totalorder %s17, 0
    %p135 = por %p133, %p134
    %s136 = ssub.s32 %s18, %s30
    %s137 = ssub.s32 %s19, %s26
    %s138 = sor.u32 %s136, %s137
    %p139 = scmp.eq.s32.totalorder %s138, 0
    %s141 = sadd.s32 %s140, 1
    %s142 = scalar_select %p139, %s140, %s141
    %p145 = pneg %p139
    %p146 = scmp.eq.s32.totalorder %s11, 1
    %p147 = por %p145, %p146
    %p148 = scmp.ne.s32.totalorder %s140, %s143
    %p149 = scmp.eq.s32.totalorder %s11, 0
    %p150 = por %p148, %p149
    %p151 = scmp.ne.s32.totalorder %s140, %s143
    %p152 = scmp.eq.s32.totalorder %s16, 1
    %p153 = por %p151, %p152
    %p154 = scmp.ne.s32.totalorder %s143, %s144
    %p155 = scmp.eq.s32.totalorder %s16, 0
    %p156 = por %p154, %p155
    %p157 = scmp.ne.s32.totalorder %s143, %s144
    %p158 = scmp.eq.s32.totalorder %s17, 1
    %p159 = por %p157, %p158
    %p161 = scmp.ne.s32.totalorder %s144, %s160
    %p162 = scmp.eq.s32.totalorder %s17, 0
    %p163 = por %p161, %p162
    %p164 = scmp.le.s32.totalorder 1, %s11
    %p165 = scmp.lt.s32.totalorder %s11, 3
    %p166 = pnand %p164, %p165
    %p167 = pneg %p166
    // Predicated region
    $region9: #{encoder_layer.2} parent=5 // pred_check
      _
    $region10: #{encoder_layer.2} parent=5 // pred_check_branch
      %169 = sbr.rel (%p166) target = $region12
    $region11: #{encoder_layer.2} parent=5 // pred_region
      %s170 = ssub.s32 %s11, 1
      // Predicated region
      $region13: #{encoder_layer.2} parent=11 // pred_check
        %p171 = pneg %p72
      $region14: #{encoder_layer.2} parent=11 // pred_check_branch
        %173 = sbr.rel (%p171) target = $region16
      $region15: #{encoder_layer.2} parent=11 // pred_region
        _
      $region16: #{encoder_layer.2} parent=11 // pred_fallthru
        _
    $region12: #{encoder_layer.2} parent=5 // pred_fallthru
      _
    %p174 = scmp.lt.s32.totalorder %s11, 2
    // Predicated region
    $region17: #{encoder_layer.2} parent=5 // pred_check
      %p175 = pneg %p174
    $region18: #{encoder_layer.2} parent=5 // pred_check_branch
      %177 = sbr.rel (%p175) target = $region20
    $region19: #{encoder_layer.2} parent=5 // pred_region
      // Predicated region
      $region21: #{encoder_layer.2} parent=19 // pred_check
        %p178 = pneg %p45
      $region22: #{encoder_layer.2} parent=19 // pred_check_branch
        %180 = sbr.rel (%p178) target = $region24
      $region23: #{encoder_layer.2} parent=19 // pred_region
        %p181 = scmp.lt.s32.totalorder %s18, 1
        %s182 = scalar_select %p181, %s18, 1
        %p183 = scmp.lt.s32.totalorder %s19, 0
        %s184 = scalar_select %p183, %s19, 0
        %s185 = sadd.s32 %s184, %s182
        %s186 = smul.addr %s185, 8
        %s187 = scalar_lea.vmem %s0, %s186
      $region24: #{encoder_layer.2} parent=19 // pred_fallthru
        _
    $region20: #{encoder_layer.2} parent=5 // pred_fallthru
      _
    %p188 = scmp.le.s32.totalorder 1, %s11
    %p189 = scmp.lt.s32.totalorder %s11, 3
    %p190 = pnand %p188, %p189
    %p191 = pneg %p190
    // Predicated region
    $region25: #{encoder_layer.2} parent=5 // pred_check
      _
    $region26: #{encoder_layer.2} parent=5 // pred_check_branch
      %193 = sbr.rel (%p190) target = $region28
    $region27: #{encoder_layer.2} parent=5 // pred_region
      %s194 = ssub.s32 %s11, 1
      %p195 = scmp.lt.s32.totalorder %s20, 1
      %s196 = scalar_select %p195, %s20, 1
      %p197 = scmp.lt.s32.totalorder %s21, 0
      %s198 = scalar_select %p197, %s21, 0
      %s199 = sadd.s32 %s198, %s196
      %s200 = smul.addr %s199, 8
      %s201 = scalar_lea.vmem %s0, %s200
      %p202 = pneg %p51
      %p203 = pneg %p48
      %p204 = pneg %p72
      %p205 = pneg %p69
      %p206 = pneg %p100
      %p207 = pneg %p97
      %p208 = scmp.lt.s32.totalorder %s20, 1
      %s209 = scalar_select %p208, %s20, 1
      %p210 = scmp.lt.s32.totalorder %s21, 0
      %s211 = scalar_select %p210, %s21, 0
      %s212 = smul.addr %s209, 4
      %s213 = sadd.s32 %s211, %s212
      %s214 = smul.addr %s213, 8
      %s215 = scalar_lea.vmem %s2, %s214
      %p216 = pneg %p128
      %p217 = pneg %p125
      %p218 = scmp.lt.s32.totalorder %s20, 1
      %s219 = scalar_select %p218, %s20, 1
      %p220 = scmp.lt.s32.totalorder %s21, 0
      %s221 = scalar_select %p220, %s21, 0
      %s222 = smul.addr %s219, 4
      %s223 = sadd.s32 %s221, %s222
      %s224 = smul.addr %s223, 8
      %s225 = scalar_lea.vmem %s3, %s224
      %p226 = pneg %p156
      %p227 = pneg %p153
      %p228 = scmp.lt.s32.totalorder %s20, 1
      %s229 = scalar_select %p228, %s20, 1
      %p230 = scmp.lt.s32.totalorder %s21, 0
      %s231 = scalar_select %p230, %s21, 0
      %s232 = smul.addr %s229, 4
      %s233 = sadd.s32 %s231, %s232
      %s234 = smul.addr %s233, 8
      %s235 = scalar_lea.vmem %s4, %s234
      %p236 = scmp.lt.s32.totalorder %s20, 1
      %s237 = scalar_select %p236, %s20, 1
      %p238 = scmp.lt.s32.totalorder %s21, 0
      %s239 = scalar_select %p238, %s21, 0
      %s240 = sadd.s32 %s239, %s237
      %s241 = smul.addr %s240, 8
      %s242 = scalar_lea.vmem %s0, %s241
      %p243 = scmp.lt.s32.totalorder %s20, 1
      %s244 = scalar_select %p243, %s20, 1
      %p245 = scmp.lt.s32.totalorder %s21, 0
      %s246 = scalar_select %p245, %s21, 0
      %s247 = smul.addr %s244, 4
      %s248 = sadd.s32 %s246, %s247
      %s249 = smul.addr %s248, 8
      %s250 = scalar_lea.vmem %s2, %s249
      %p251 = scmp.lt.s32.totalorder %s20, 1
      %s252 = scalar_select %p251, %s20, 1
      %p253 = scmp.lt.s32.totalorder %s21, 0
      %s254 = scalar_select %p253, %s21, 0
      %s255 = smul.addr %s252, 4
      %s256 = sadd.s32 %s254, %s255
      %s257 = smul.addr %s256, 8
      %s258 = scalar_lea.vmem %s3, %s257
      %p259 = scmp.lt.s32.totalorder %s20, 1
      %s260 = scalar_select %p259, %s20, 1
      %p261 = scmp.lt.s32.totalorder %s21, 0
      %s262 = scalar_select %p261, %s21, 0
      %s263 = smul.addr %s260, 4
      %s264 = sadd.s32 %s262, %s263
      %s265 = smul.addr %s264, 8
      %s266 = scalar_lea.vmem %s4, %s265
      %v267 = vld [vmem:[%s242] sm:$0xff]
      %v268 = vld [vmem:[%s1] sm:$0xff]
      %v269 = vld [vmem:[%s1 + $0x8] sm:$0xff]
      %v270 = vld [vmem:[%s1 + $0x10] sm:$0xff]
      %v271 = vld [vmem:[%s1 + $0x18] sm:$0xff]
      %vm272 = vcmask 261120
      %v274 = vsel %vm272, %v267, 0
      %276 = vmatprep.subr.mxu0 0.0
      %277 = vmatpush1.msra.mxu0 %v268
      %278 = vmatprep.subr.mxu0 0.0
      %279 = vmatpush1.msra.mxu0 %v269
      %280 = vmatprep.subr.mxu0 0.0
      %281 = vmatpush1.msra.mxu0 %v270
      %282 = vmatprep.subr.mxu0 0.0
      %283 = vmatpush1.msra.mxu0 %v271
      %284 = vmatprep.subr.mxu0 0.0
      %285 = vmatpush1.msra.mxu0 0.0
      %286 = vmatprep.subr.mxu0 0.0
      %287 = vmatpush1.msra.mxu0 0.0
      %288 = vmatprep.subr.mxu0 0.0
      %289 = vmatpush1.msra.mxu0 0.0
      %290 = vmatprep.subr.mxu0 0.0
      %291 = vmatpush1.msra.mxu0 0.0
      %292 = vmatprep.subr.mxu0 0.0
      %293 = vmatpush1.msra.mxu0 0.0
      %294 = vmatprep.subr.mxu0 0.0
      %295 = vmatpush1.msra.mxu0 0.0
      %296 = vmatprep.subr.mxu0 0.0
      %297 = vmatpush1.msra.mxu0 0.0
      %298 = vmatprep.subr.mxu0 0.0
      %299 = vmatpush1.msra.mxu0 0.0
      %300 = vmatprep.subr.mxu0 0.0
      %301 = vmatpush1.msra.mxu0 0.0
      %302 = vmatprep.subr.mxu0 0.0
      %303 = vmatpush1.msra.mxu0 0.0
      %304 = vmatprep.subr.mxu0 0.0
      %305 = vmatpush1.msra.mxu0 0.0
      %306 = vmatprep.subr.mxu0 0.0
      %307 = vmatpush1.msra.mxu0 0.0
      %308 = vmatprep.subr.mxu0 0.0
      %309 = vmatpush1.msra.mxu0 0.0
      %310 = vmatprep.subr.mxu0 0.0
      %311 = vmatpush1.msra.mxu0 0.0
      %312 = vmatprep.subr.mxu0 0.0
      %313 = vmatpush1.msra.mxu0 0.0
      %314 = vmatprep.subr.mxu0 0.0
      %315 = vmatpush1.msra.mxu0 0.0
      %316 = vmatprep.subr.mxu0 0.0
      %317 = vmatpush1.msra.mxu0 0.0
      %318 = vmatprep.subr.mxu0 0.0
      %319 = vmatpush1.msra.mxu0 0.0
      %320 = vmatprep.subr.mxu0 0.0
      %321 = vmatpush1.msra.mxu0 0.0
      %322 = vmatprep.subr.mxu0 0.0
      %323 = vmatpush1.msra.mxu0 0.0
      %324 = vmatprep.subr.mxu0 0.0
      %325 = vmatpush1.msra.mxu0 0.0
      %326 = vmatprep.subr.mxu0 0.0
      %327 = vmatpush1.msra.mxu0 0.0
      %328 = vmatprep.subr.mxu0 0.0
      %329 = vmatpush1.msra.mxu0 0.0
      %330 = vmatprep.subr.mxu0 0.0
      %331 = vmatpush1.msra.mxu0 0.0
      %332 = vmatprep.subr.mxu0 0.0
      %333 = vmatpush1.msra.mxu0 0.0
      %334 = vmatprep.subr.mxu0 0.0
      %335 = vmatpush1.msra.mxu0 0.0
      %336 = vmatprep.subr.mxu0 0.0
      %337 = vmatpush1.msra.mxu0 0.0
      %338 = vmatprep.subr.mxu0 0.0
      %339 = vmatpush1.msra.mxu0 0.0
      %340 = vmatprep.mubr.f32.mxu0 0.0
      %341 = vmatmul.mubr.f32.gmra.mrb[0].mxu0 %v274
      %v342 = vpop.f32.mrb[0].mxu0
      %v343 = vadd.f32 0.0, %v342
      %v344 = vpop.f32.mrb[0].mxu0
      %345 = vdwg.mxu0
      %vm346 = vcmask 64512
      %347 = vst.msk [vmem:[%s250] sm:$0xff] %vm346, %v343
      %349 = vrot.lane.b32.xlu0 %v343, 96
      %v350 = vpop.permute.xlu0 %349
      %352 = vst.msk [vmem:[%s258] sm:$0xff] %vm346, %v350
      %353 = vrot.lane.b32.xlu0 %v343, 64
      %v354 = vpop.permute.xlu0 %353
      %356 = vst.msk [vmem:[%s266] sm:$0xff] %vm346, %v354
      %357 = vrot.lane.b32.xlu0 %v343, 120
      %v358 = vpop.permute.xlu0 %357
      %s360 = scalar_lea.vmem %s250, 8
      %361 = vst.msk [vmem:[%s360] sm:$0xff] %vm346, %v358
      %362 = vrot.lane.b32.xlu0 %v343, 88
      %v363 = vpop.permute.xlu0 %362
      %s365 = scalar_lea.vmem %s258, 8
      %366 = vst.msk [vmem:[%s365] sm:$0xff] %vm346, %v363
      %367 = vrot.lane.b32.xlu0 %v343, 56
      %v368 = vpop.permute.xlu0 %367
      %s370 = scalar_lea.vmem %s266, 8
      %371 = vst.msk [vmem:[%s370] sm:$0xff] %vm346, %v368
      %372 = vrot.lane.b32.xlu0 %v343, 112
      %v373 = vpop.permute.xlu0 %372
      %s375 = scalar_lea.vmem %s250, 16
      %376 = vst.msk [vmem:[%s375] sm:$0xff] %vm346, %v373
      %377 = vrot.lane.b32.xlu0 %v343, 80
      %v378 = vpop.permute.xlu0 %377
      %s380 = scalar_lea.vmem %s258, 16
      %381 = vst.msk [vmem:[%s380] sm:$0xff] %vm346, %v378
      %382 = vrot.lane.b32.xlu0 %v343, 48
      %v383 = vpop.permute.xlu0 %382
      %s385 = scalar_lea.vmem %s266, 16
      %386 = vst.msk [vmem:[%s385] sm:$0xff] %vm346, %v383
      %387 = vrot.lane.b32.xlu0 %v343, 104
      %v388 = vpop.permute.xlu0 %387
      %s390 = scalar_lea.vmem %s250, 24
      %391 = vst.msk [vmem:[%s390] sm:$0xff] %vm346, %v388
      %392 = vrot.lane.b32.xlu0 %v343, 72
      %v393 = vpop.permute.xlu0 %392
      %s395 = scalar_lea.vmem %s258, 24
      %396 = vst.msk [vmem:[%s395] sm:$0xff] %vm346, %v393
      %397 = vrot.lane.b32.xlu0 %v343, 40
      %v398 = vpop.permute.xlu0 %397
      %s400 = scalar_lea.vmem %s266, 24
      %401 = vst.msk [vmem:[%s400] sm:$0xff] %vm346, %v398
      %p402 = scmp.lt.s32.totalorder %s20, 1
      %s403 = scalar_select %p402, %s20, 1
      %p404 = scmp.lt.s32.totalorder %s21, 0
      %s405 = scalar_select %p404, %s21, 0
      %s406 = smul.addr %s403, 4
      %s407 = sadd.s32 %s405, %s406
      %s408 = smul.addr %s407, 8
      %s409 = scalar_lea.vmem %s2, %s408
      %p410 = scmp.lt.s32.totalorder %s20, 1
      %s411 = scalar_select %p410, %s20, 1
      %p412 = scmp.lt.s32.totalorder %s21, 0
      %s413 = scalar_select %p412, %s21, 0
      %s414 = smul.addr %s411, 4
      %s415 = sadd.s32 %s413, %s414
      %s416 = smul.addr %s415, 8
      %s417 = scalar_lea.vmem %s3, %s416
      %p418 = scmp.lt.s32.totalorder %s20, 1
      %s419 = scalar_select %p418, %s20, 1
      %p420 = scmp.lt.s32.totalorder %s21, 0
      %s421 = scalar_select %p420, %s21, 0
      %s422 = smul.addr %s419, 4
      %s423 = sadd.s32 %s421, %s422
      %s424 = smul.addr %s423, 8
      %s425 = scalar_lea.vmem %s4, %s424
      // Predicated region
      $region29: #{encoder_layer.2} parent=27 // pred_check
        %p426 = pneg %p97
      $region30: #{encoder_layer.2} parent=27 // pred_check_branch
        %428 = sbr.rel (%p426) target = $region32
      $region31: #{encoder_layer.2} parent=27 // pred_region
        _
      $region32: #{encoder_layer.2} parent=27 // pred_fallthru
        _
      // Predicated region
      $region33: #{encoder_layer.2} parent=27 // pred_check
        %p429 = pneg %p125
      $region34: #{encoder_layer.2} parent=27 // pred_check_branch
        %431 = sbr.rel (%p429) target = $region36
      $region35: #{encoder_layer.2} parent=27 // pred_region
        _
      $region36: #{encoder_layer.2} parent=27 // pred_fallthru
        _
      // Predicated region
      $region37: #{encoder_layer.2} parent=27 // pred_check
        %p432 = pneg %p153
      $region38: #{encoder_layer.2} parent=27 // pred_check_branch
        %434 = sbr.rel (%p432) target = $region40
      $region39: #{encoder_layer.2} parent=27 // pred_region
        _
      $region40: #{encoder_layer.2} parent=27 // pred_fallthru
        _
    $region28: #{encoder_layer.2} parent=5 // pred_fallthru
      _
    %p435 = scmp.le.s32.totalorder 2, %s11
    // Predicated region
    $region41: #{encoder_layer.2} parent=5 // pred_check
      %p436 = pneg %p435
    $region42: #{encoder_layer.2} parent=5 // pred_check_branch
      %438 = sbr.rel (%p436) target = $region44
    $region43: #{encoder_layer.2} parent=5 // pred_region
      %s439 = ssub.s32 %s11, 2
      // Predicated region
      $region45: #{encoder_layer.2} parent=43 // pred_check
        %p440 = pneg %p103
      $region46: #{encoder_layer.2} parent=43 // pred_check_branch
        %442 = sbr.rel (%p440) target = $region48
      $region47: #{encoder_layer.2} parent=43 // pred_region
        %p443 = scmp.lt.s32.totalorder %s22, 1
        %s444 = scalar_select %p443, %s22, 1
        %p445 = scmp.lt.s32.totalorder %s23, 0
        %s446 = scalar_select %p445, %s23, 0
        %s447 = smul.addr %s444, 4
        %s448 = sadd.s32 %s446, %s447
        %s449 = smul.addr %s448, 8
        %s450 = scalar_lea.vmem %s2, %s449
      $region48: #{encoder_layer.2} parent=43 // pred_fallthru
        _
      // Predicated region
      $region49: #{encoder_layer.2} parent=43 // pred_check
        %p451 = pneg %p131
      $region50: #{encoder_layer.2} parent=43 // pred_check_branch
        %453 = sbr.rel (%p451) target = $region52
      $region51: #{encoder_layer.2} parent=43 // pred_region
        %p454 = scmp.lt.s32.totalorder %s22, 1
        %s455 = scalar_select %p454, %s22, 1
        %p456 = scmp.lt.s32.totalorder %s23, 0
        %s457 = scalar_select %p456, %s23, 0
        %s458 = smul.addr %s455, 4
        %s459 = sadd.s32 %s457, %s458
        %s460 = smul.addr %s459, 8
        %s461 = scalar_lea.vmem %s3, %s460
      $region52: #{encoder_layer.2} parent=43 // pred_fallthru
        _
      // Predicated region
      $region53: #{encoder_layer.2} parent=43 // pred_check
        %p462 = pneg %p159
      $region54: #{encoder_layer.2} parent=43 // pred_check_branch
        %464 = sbr.rel (%p462) target = $region56
      $region55: #{encoder_layer.2} parent=43 // pred_region
        %p465 = scmp.lt.s32.totalorder %s22, 1
        %s466 = scalar_select %p465, %s22, 1
        %p467 = scmp.lt.s32.totalorder %s23, 0
        %s468 = scalar_select %p467, %s23, 0
        %s469 = smul.addr %s466, 4
        %s470 = sadd.s32 %s468, %s469
        %s471 = smul.addr %s470, 8
        %s472 = scalar_lea.vmem %s4, %s471
      $region56: #{encoder_layer.2} parent=43 // pred_fallthru
        _
    $region44: #{encoder_layer.2} parent=5 // pred_fallthru
      _
  $region6: #{encoder_layer.2} parent=0 // loop_footer
    %s15 = sadd.s32 1, %s11
  $region7: #{encoder_layer.2} parent=0 // loop_footer_branch
    %10 = sbr.rel target = $region3
  $region8: #{encoder_layer.2} parent=0 // loop_exit
    _

// kernel: encoder_layer.3
$region0: #{encoder_layer.3}
  #allocation0 [shape = 'u32[]', space=smem, size = 0x4, offset = 0x4, fixed_abs, tag = 'smem constant byte address 0x4 - core index']
  #allocation1 [shape = 'u32[144,128]{1,0:T(1,128)}', space=vmem, size = 0x12000, scoped, tag = 'internal scratch']
  %s0 = inlined_call_operand.vmem [shape: f32[2,8,32], index: 0, kind: input, shape index: {}]
  %s1 = inlined_call_operand.vmem [shape: f32[2,4,8,8], index: 1, kind: input, shape index: {}]
  %s2 = inlined_call_operand.vmem [shape: f32[2,4,8,8], index: 2, kind: input, shape index: {}]
  %s3 = inlined_call_operand.vmem [shape: f32[2,4,8,8], index: 3, kind: input, shape index: {}]
  %s4 = inlined_call_operand.vmem [shape: f32[32,32], index: 4, kind: input, shape index: {}]
  %s5 = inlined_call_operand.vmem [shape: f32[1,32], index: 5, kind: input, shape index: {}]
  %s6 = inlined_call_operand.vmem [shape: f32[1,32], index: 6, kind: input, shape index: {}]
  %s7 = inlined_call_operand.vmem [shape: f32[32,64], index: 7, kind: input, shape index: {}]
  %s8 = inlined_call_operand.vmem [shape: f32[1,64], index: 8, kind: input, shape index: {}]
  %s9 = inlined_call_operand.vmem [shape: f32[64,32], index: 9, kind: input, shape index: {}]
  %s10 = inlined_call_operand.vmem [shape: f32[1,32], index: 10, kind: input, shape index: {}]
  %s11 = inlined_call_operand.vmem [shape: f32[1,32], index: 11, kind: input, shape index: {}]
  %s12 = inlined_call_operand.vmem [shape: f32[1,32], index: 12, kind: input, shape index: {}]
  %s13 = inlined_call_operand.hbm [shape: f32[2,8,32], index: 13, kind: output, shape index: {0}]
  %s14 = inlined_call_operand.hbm [shape: f32[2,4,8,8], index: 14, kind: output, shape index: {1}]
  %15 = xla_tuple %s13, %s14
  %s16 = sld [smem:[#allocation0]]
  $region93: #{encoder_layer.3} parent=0
    _
  %s18 = ssub.s32 1, %s16
  %s19 = scalar_select 0, %s18, %s16
  $region1: #{encoder_layer.3} parent=0
    #allocation2 [shape = 'u8[8192]{0}', space=vmem, size = 0x2000, scoped, tag = 'output window, operand 0']
    #allocation3 [shape = 's32[2]{0}', space=sflag, size = 0x8, scoped, tag = 'scoped memory for encoder_layer.3']
    #allocation4 [shape = 'u8[32768]{0}', space=vmem, size = 0x8000, scoped, tag = 'output window, operand 1']
    #allocation5 [shape = 's32[2]{0}', space=sflag, size = 0x8, scoped, tag = 'scoped memory for encoder_layer.3']
    %20 = vsyncpa [#allocation3], 0
    %s21 = scalar_lea.sflag [#allocation3], 1
    %22 = vsyncpa %s21, 0
    %23 = vsyncpa [#allocation5], 0
    %s24 = scalar_lea.sflag [#allocation5], 1
    %25 = vsyncpa %s24, 0
    loop: start=0, step=1, limit=4
    $region2: #{encoder_layer.3} parent=1 // loop_pre_header
      _
    $region3: #{encoder_layer.3} parent=1 // loop_header
      %s27 = sphi 0, %s31
      %p28 = scmp.ge.s32.totalorder %s27, 4
      %s34 = sphi 0, %s46
      %s35 = sphi 0, %s42
      %s36 = sphi 0, %s34
      %s37 = sphi 0, %s35
      %s38 = sphi 0, %s36
      %s39 = sphi 0, %s37
      %s51 = sphi 0, %s53
      %s54 = sphi 0, %s51
      %s55 = sphi 0, %s54
      %s71 = sphi 0, %s55
      %s79 = sphi 0, %s81
      %s82 = sphi 0, %s79
      %s83 = sphi 0, %s82
      %s99 = sphi 0, %s83
      %s105 = sphi 0, %s107
      %s108 = sphi 0, %s105
      %s109 = sphi 0, %s108
      %s125 = sphi 0, %s109
      %s131 = sphi 0, %s133
      %s134 = sphi 0, %s131
      %s135 = sphi 0, %s134
      %s151 = sphi 0, %s135
      %s155 = sphi 0, %s155
      %s157 = sphi 0, %s155
      %s158 = sphi 0, %s157
      %s172 = sphi 0, %s158
      %s176 = sphi 0, %s176
      %s178 = sphi 0, %s176
      %s179 = sphi 0, %s178
      %s193 = sphi 0, %s179
      %s197 = sphi 0, %s197
      %s199 = sphi 0, %s197
      %s200 = sphi 0, %s199
      %s214 = sphi 0, %s200
      %s218 = sphi 0, %s218
      %s220 = sphi 0, %s218
      %s221 = sphi 0, %s220
      %s235 = sphi 0, %s221
      %s239 = sphi 0, %s239
      %s241 = sphi 0, %s239
      %s242 = sphi 0, %s241
      %s256 = sphi 0, %s242
      %s260 = sphi 0, %s260
      %s262 = sphi 0, %s260
      %s263 = sphi 0, %s262
      %s277 = sphi 0, %s263
      %s281 = sphi 0, %s281
      %s283 = sphi 0, %s281
      %s284 = sphi 0, %s283
      %s298 = sphi 0, %s284
      %s302 = sphi 0, %s302
      %s304 = sphi 0, %s302
      %s305 = sphi 0, %s304
      %s319 = sphi 0, %s305
      %s323 = sphi 0, %s323
      %s325 = sphi 0, %s323
      %s326 = sphi 0, %s325
      %s340 = sphi 0, %s326
      %s348 = sphi 0, %s350
      %s351 = sphi 0, %s348
      %s352 = sphi 0, %s351
      %s368 = sphi 0, %s352
      %s376 = sphi 0, %s378
      %s379 = sphi 0, %s376
      %s380 = sphi 0, %s379
      %s396 = sphi 0, %s380
    $region4: #{encoder_layer.3} parent=1 // loop_header_branch
      %30 = sbr.rel (%p28) target = $region8
    $region5: #{encoder_layer.3} parent=1 // loop_body
      %s32 = ssub.s32 %s27, 1
      %s33 = ssub.s32 %s27, 2
      %s40 = sadd.s32 1, %s35
      %p41 = scmp.ge.s32.totalorder %s40, 1
      %s42 = scalar_select %p41, 0, %s40
      %s43 = sadd.s32 1, %s34
      %s44 = scalar_select %p41, %s43, %s34
      %p45 = scmp.ge.s32.totalorder %s44, 2
      %s46 = scalar_select %p45, 0, %s44
      %s47 = ssub.s32 %s34, %s46
      %s48 = ssub.s32 %s35, %s42
      %s49 = sor.u32 %s47, %s48
      %p50 = scmp.eq.s32.totalorder %s49, 0
      %s52 = sadd.s32 %s51, 1
      %s53 = scalar_select %p50, %s51, %s52
      %p56 = pneg %p50
      %p57 = scmp.eq.s32.totalorder %s27, 1
      %p58 = por %p56, %p57
      %p59 = scmp.ne.s32.totalorder %s51, %s54
      %p60 = scmp.eq.s32.totalorder %s27, 0
      %p61 = por %p59, %p60
      %p62 = scmp.ne.s32.totalorder %s51, %s54
      %p63 = scmp.eq.s32.totalorder %s32, 1
      %p64 = por %p62, %p63
      %p65 = scmp.ne.s32.totalorder %s54, %s55
      %p66 = scmp.eq.s32.totalorder %s32, 0
      %p67 = por %p65, %p66
      %p68 = scmp.ne.s32.totalorder %s54, %s55
      %p69 = scmp.eq.s32.totalorder %s33, 1
      %p70 = por %p68, %p69
      %p72 = scmp.ne.s32.totalorder %s55, %s71
      %p73 = scmp.eq.s32.totalorder %s33, 0
      %p74 = por %p72, %p73
      %s75 = ssub.s32 %s34, %s46
      %s76 = ssub.s32 %s35, %s42
      %s77 = sor.u32 %s75, %s76
      %p78 = scmp.eq.s32.totalorder %s77, 0
      %s80 = sadd.s32 %s79, 1
      %s81 = scalar_select %p78, %s79, %s80
      %p84 = pneg %p78
      %p85 = scmp.eq.s32.totalorder %s27, 1
      %p86 = por %p84, %p85
      %p87 = scmp.ne.s32.totalorder %s79, %s82
      %p88 = scmp.eq.s32.totalorder %s27, 0
      %p89 = por %p87, %p88
      %p90 = scmp.ne.s32.totalorder %s79, %s82
      %p91 = scmp.eq.s32.totalorder %s32, 1
      %p92 = por %p90, %p91
      %p93 = scmp.ne.s32.totalorder %s82, %s83
      %p94 = scmp.eq.s32.totalorder %s32, 0
      %p95 = por %p93, %p94
      %p96 = scmp.ne.s32.totalorder %s82, %s83
      %p97 = scmp.eq.s32.totalorder %s33, 1
      %p98 = por %p96, %p97
      %p100 = scmp.ne.s32.totalorder %s83, %s99
      %p101 = scmp.eq.s32.totalorder %s33, 0
      %p102 = por %p100, %p101
      %s103 = ssub.s32 %s34, %s46
      %p104 = scmp.eq.s32.totalorder %s103, 0
      %s106 = sadd.s32 %s105, 1
      %s107 = scalar_select %p104, %s105, %s106
      %p110 = pneg %p104
      %p111 = scmp.eq.s32.totalorder %s27, 1
      %p112 = por %p110, %p111
      %p113 = scmp.ne.s32.totalorder %s105, %s108
      %p114 = scmp.eq.s32.totalorder %s27, 0
      %p115 = por %p113, %p114
      %p116 = scmp.ne.s32.totalorder %s105, %s108
      %p117 = scmp.eq.s32.totalorder %s32, 1
      %p118 = por %p116, %p117
      %p119 = scmp.ne.s32.totalorder %s108, %s109
      %p120 = scmp.eq.s32.totalorder %s32, 0
      %p121 = por %p119, %p120
      %p122 = scmp.ne.s32.totalorder %s108, %s109
      %p123 = scmp.eq.s32.totalorder %s33, 1
      %p124 = por %p122, %p123
      %p126 = scmp.ne.s32.totalorder %s109, %s125
      %p127 = scmp.eq.s32.totalorder %s33, 0
      %p128 = por %p126, %p127
      %s129 = ssub.s32 %s34, %s46
      %p130 = scmp.eq.s32.totalorder %s129, 0
      %s132 = sadd.s32 %s131, 1
      %s133 = scalar_select %p130, %s131, %s132
      %p136 = pneg %p130
      %p137 = scmp.eq.s32.totalorder %s27, 1
      %p138 = por %p136, %p137
      %p139 = scmp.ne.s32.totalorder %s131, %s134
      %p140 = scmp.eq.s32.totalorder %s27, 0
      %p141 = por %p139, %p140
      %p142 = scmp.ne.s32.totalorder %s131, %s134
      %p143 = scmp.eq.s32.totalorder %s32, 1
      %p144 = por %p142, %p143
      %p145 = scmp.ne.s32.totalorder %s134, %s135
      %p146 = scmp.eq.s32.totalorder %s32, 0
      %p147 = por %p145, %p146
      %p148 = scmp.ne.s32.totalorder %s134, %s135
      %p149 = scmp.eq.s32.totalorder %s33, 1
      %p150 = por %p148, %p149
      %p152 = scmp.ne.s32.totalorder %s135, %s151
      %p153 = scmp.eq.s32.totalorder %s33, 0
      %p154 = por %p152, %p153
      %s156 = sadd.s32 %s155, 1
      %p159 = scmp.eq.s32.totalorder %s27, 1
      %p160 = scmp.ne.s32.totalorder %s155, %s157
      %p161 = scmp.eq.s32.totalorder %s27, 0
      %p162 = por %p160, %p161
      %p163 = scmp.ne.s32.totalorder %s155, %s157
      %p164 = scmp.eq.s32.totalorder %s32, 1
      %p165 = por %p163, %p164
      %p166 = scmp.ne.s32.totalorder %s157, %s158
      %p167 = scmp.eq.s32.totalorder %s32, 0
      %p168 = por %p166, %p167
      %p169 = scmp.ne.s32.totalorder %s157, %s158
      %p170 = scmp.eq.s32.totalorder %s33, 1
      %p171 = por %p169, %p170
      %p173 = scmp.ne.s32.totalorder %s158, %s172
      %p174 = scmp.eq.s32.totalorder %s33, 0
      %p175 = por %p173, %p174
      %s177 = sadd.s32 %s176, 1
      %p180 = scmp.eq.s32.totalorder %s27, 1
      %p181 = scmp.ne.s32.totalorder %s176, %s178
      %p182 = scmp.eq.s32.totalorder %s27, 0
      %p183 = por %p181, %p182
      %p184 = scmp.ne.s32.totalorder %s176, %s178
      %p185 = scmp.eq.s32.totalorder %s32, 1
      %p186 = por %p184, %p185
      %p187 = scmp.ne.s32.totalorder %s178, %s179
      %p188 = scmp.eq.s32.totalorder %s32, 0
      %p189 = por %p187, %p188
      %p190 = scmp.ne.s32.totalorder %s178, %s179
      %p191 = scmp.eq.s32.totalorder %s33, 1
      %p192 = por %p190, %p191
      %p194 = scmp.ne.s32.totalorder %s179, %s193
      %p195 = scmp.eq.s32.totalorder %s33, 0
      %p196 = por %p194, %p195
      %s198 = sadd.s32 %s197, 1
      %p201 = scmp.eq.s32.totalorder %s27, 1
      %p202 = scmp.ne.s32.totalorder %s197, %s199
      %p203 = scmp.eq.s32.totalorder %s27, 0
      %p204 = por %p202, %p203
      %p205 = scmp.ne.s32.totalorder %s197, %s199
      %p206 = scmp.eq.s32.totalorder %s32, 1
      %p207 = por %p205, %p206
      %p208 = scmp.ne.s32.totalorder %s199, %s200
      %p209 = scmp.eq.s32.totalorder %s32, 0
      %p210 = por %p208, %p209
      %p211 = scmp.ne.s32.totalorder %s199, %s200
      %p212 = scmp.eq.s32.totalorder %s33, 1
      %p213 = por %p211, %p212
      %p215 = scmp.ne.s32.totalorder %s200, %s214
      %p216 = scmp.eq.s32.totalorder %s33, 0
      %p217 = por %p215, %p216
      %s219 = sadd.s32 %s218, 1
      %p222 = scmp.eq.s32.totalorder %s27, 1
      %p223 = scmp.ne.s32.totalorder %s218, %s220
      %p224 = scmp.eq.s32.totalorder %s27, 0
      %p225 = por %p223, %p224
      %p226 = scmp.ne.s32.totalorder %s218, %s220
      %p227 = scmp.eq.s32.totalorder %s32, 1
      %p228 = por %p226, %p227
      %p229 = scmp.ne.s32.totalorder %s220, %s221
      %p230 = scmp.eq.s32.totalorder %s32, 0
      %p231 = por %p229, %p230
      %p232 = scmp.ne.s32.totalorder %s220, %s221
      %p233 = scmp.eq.s32.totalorder %s33, 1
      %p234 = por %p232, %p233
      %p236 = scmp.ne.s32.totalorder %s221, %s235
      %p237 = scmp.eq.s32.totalorder %s33, 0
      %p238 = por %p236, %p237
      %s240 = sadd.s32 %s239, 1
      %p243 = scmp.eq.s32.totalorder %s27, 1
      %p244 = scmp.ne.s32.totalorder %s239, %s241
      %p245 = scmp.eq.s32.totalorder %s27, 0
      %p246 = por %p244, %p245
      %p247 = scmp.ne.s32.totalorder %s239, %s241
      %p248 = scmp.eq.s32.totalorder %s32, 1
      %p249 = por %p247, %p248
      %p250 = scmp.ne.s32.totalorder %s241, %s242
      %p251 = scmp.eq.s32.totalorder %s32, 0
      %p252 = por %p250, %p251
      %p253 = scmp.ne.s32.totalorder %s241, %s242
      %p254 = scmp.eq.s32.totalorder %s33, 1
      %p255 = por %p253, %p254
      %p257 = scmp.ne.s32.totalorder %s242, %s256
      %p258 = scmp.eq.s32.totalorder %s33, 0
      %p259 = por %p257, %p258
      %s261 = sadd.s32 %s260, 1
      %p264 = scmp.eq.s32.totalorder %s27, 1
      %p265 = scmp.ne.s32.totalorder %s260, %s262
      %p266 = scmp.eq.s32.totalorder %s27, 0
      %p267 = por %p265, %p266
      %p268 = scmp.ne.s32.totalorder %s260, %s262
      %p269 = scmp.eq.s32.totalorder %s32, 1
      %p270 = por %p268, %p269
      %p271 = scmp.ne.s32.totalorder %s262, %s263
      %p272 = scmp.eq.s32.totalorder %s32, 0
      %p273 = por %p271, %p272
      %p274 = scmp.ne.s32.totalorder %s262, %s263
      %p275 = scmp.eq.s32.totalorder %s33, 1
      %p276 = por %p274, %p275
      %p278 = scmp.ne.s32.totalorder %s263, %s277
      %p279 = scmp.eq.s32.totalorder %s33, 0
      %p280 = por %p278, %p279
      %s282 = sadd.s32 %s281, 1
      %p285 = scmp.eq.s32.totalorder %s27, 1
      %p286 = scmp.ne.s32.totalorder %s281, %s283
      %p287 = scmp.eq.s32.totalorder %s27, 0
      %p288 = por %p286, %p287
      %p289 = scmp.ne.s32.totalorder %s281, %s283
      %p290 = scmp.eq.s32.totalorder %s32, 1
      %p291 = por %p289, %p290
      %p292 = scmp.ne.s32.totalorder %s283, %s284
      %p293 = scmp.eq.s32.totalorder %s32, 0
      %p294 = por %p292, %p293
      %p295 = scmp.ne.s32.totalorder %s283, %s284
      %p296 = scmp.eq.s32.totalorder %s33, 1
      %p297 = por %p295, %p296
      %p299 = scmp.ne.s32.totalorder %s284, %s298
      %p300 = scmp.eq.s32.totalorder %s33, 0
      %p301 = por %p299, %p300
      %s303 = sadd.s32 %s302, 1
      %p306 = scmp.eq.s32.totalorder %s27, 1
      %p307 = scmp.ne.s32.totalorder %s302, %s304
      %p308 = scmp.eq.s32.totalorder %s27, 0
      %p309 = por %p307, %p308
      %p310 = scmp.ne.s32.totalorder %s302, %s304
      %p311 = scmp.eq.s32.totalorder %s32, 1
      %p312 = por %p310, %p311
      %p313 = scmp.ne.s32.totalorder %s304, %s305
      %p314 = scmp.eq.s32.totalorder %s32, 0
      %p315 = por %p313, %p314
      %p316 = scmp.ne.s32.totalorder %s304, %s305
      %p317 = scmp.eq.s32.totalorder %s33, 1
      %p318 = por %p316, %p317
      %p320 = scmp.ne.s32.totalorder %s305, %s319
      %p321 = scmp.eq.s32.totalorder %s33, 0
      %p322 = por %p320, %p321
      %s324 = sadd.s32 %s323, 1
      %p327 = scmp.eq.s32.totalorder %s27, 1
      %p328 = scmp.ne.s32.totalorder %s323, %s325
      %p329 = scmp.eq.s32.totalorder %s27, 0
      %p330 = por %p328, %p329
      %p331 = scmp.ne.s32.totalorder %s323, %s325
      %p332 = scmp.eq.s32.totalorder %s32, 1
      %p333 = por %p331, %p332
      %p334 = scmp.ne.s32.totalorder %s325, %s326
      %p335 = scmp.eq.s32.totalorder %s32, 0
      %p336 = por %p334, %p335
      %p337 = scmp.ne.s32.totalorder %s325, %s326
      %p338 = scmp.eq.s32.totalorder %s33, 1
      %p339 = por %p337, %p338
      %p341 = scmp.ne.s32.totalorder %s326, %s340
      %p342 = scmp.eq.s32.totalorder %s33, 0
      %p343 = por %p341, %p342
      %s344 = ssub.s32 %s34, %s46
      %s345 = ssub.s32 %s35, %s42
      %s346 = sor.u32 %s344, %s345
      %p347 = scmp.eq.s32.totalorder %s346, 0
      %s349 = sadd.s32 %s348, 1
      %s350 = scalar_select %p347, %s348, %s349
      %p353 = pneg %p347
      %p354 = scmp.eq.s32.totalorder %s27, 1
      %p355 = por %p353, %p354
      %p356 = scmp.ne.s32.totalorder %s348, %s351
      %p357 = scmp.eq.s32.totalorder %s27, 0
      %p358 = por %p356, %p357
      %p359 = scmp.ne.s32.totalorder %s348, %s351
      %p360 = scmp.eq.s32.totalorder %s32, 1
      %p361 = por %p359, %p360
      %p362 = scmp.ne.s32.totalorder %s351, %s352
      %p363 = scmp.eq.s32.totalorder %s32, 0
      %p364 = por %p362, %p363
      %p365 = scmp.ne.s32.totalorder %s351, %s352
      %p366 = scmp.eq.s32.totalorder %s33, 1
      %p367 = por %p365, %p366
      %p369 = scmp.ne.s32.totalorder %s352, %s368
      %p370 = scmp.eq.s32.totalorder %s33, 0
      %p371 = por %p369, %p370
      %s372 = ssub.s32 %s34, %s46
      %s373 = ssub.s32 %s35, %s42
      %s374 = sor.u32 %s372, %s373
      %p375 = scmp.eq.s32.totalorder %s374, 0
      %s377 = sadd.s32 %s376, 1
      %s378 = scalar_select %p375, %s376, %s377
      %p381 = pneg %p375
      %p382 = scmp.eq.s32.totalorder %s27, 1
      %p383 = por %p381, %p382
      %p384 = scmp.ne.s32.totalorder %s376, %s379
      %p385 = scmp.eq.s32.totalorder %s27, 0
      %p386 = por %p384, %p385
      %p387 = scmp.ne.s32.totalorder %s376, %s379
      %p388 = scmp.eq.s32.totalorder %s32, 1
      %p389 = por %p387, %p388
      %p390 = scmp.ne.s32.totalorder %s379, %s380
      %p391 = scmp.eq.s32.totalorder %s32, 0
      %p392 = por %p390, %p391
      %p393 = scmp.ne.s32.totalorder %s379, %s380
      %p394 = scmp.eq.s32.totalorder %s33, 1
      %p395 = por %p393, %p394
      %p397 = scmp.ne.s32.totalorder %s380, %s396
      %p398 = scmp.eq.s32.totalorder %s33, 0
      %p399 = por %p397, %p398
      %p400 = scmp.le.s32.totalorder 1, %s27
      %p401 = scmp.lt.s32.totalorder %s27, 3
      %p402 = pnand %p400, %p401
      %p403 = pneg %p402
      // Predicated region
      $region9: #{encoder_layer.3} parent=5 // pred_check
        _
      $region10: #{encoder_layer.3} parent=5 // pred_check_branch
        %405 = sbr.rel (%p402) target = $region12
      $region11: #{encoder_layer.3} parent=5 // pred_region
        %s406 = ssub.s32 %s27, 1
        // Predicated region
        $region13: #{encoder_layer.3} parent=11 // pred_check
          %p407 = pneg %p168
        $region14: #{encoder_layer.3} parent=11 // pred_check_branch
          %409 = sbr.rel (%p407) target = $region16
        $region15: #{encoder_layer.3} parent=11 // pred_region
          _
        $region16: #{encoder_layer.3} parent=11 // pred_fallthru
          _
        // Predicated region
        $region17: #{encoder_layer.3} parent=11 // pred_check
          %p410 = pneg %p189
        $region18: #{encoder_layer.3} parent=11 // pred_check_branch
          %412 = sbr.rel (%p410) target = $region20
        $region19: #{encoder_layer.3} parent=11 // pred_region
          _
        $region20: #{encoder_layer.3} parent=11 // pred_fallthru
          _
        // Predicated region
        $region21: #{encoder_layer.3} parent=11 // pred_check
          %p413 = pneg %p210
        $region22: #{encoder_layer.3} parent=11 // pred_check_branch
          %415 = sbr.rel (%p413) target = $region24
        $region23: #{encoder_layer.3} parent=11 // pred_region
          _
        $region24: #{encoder_layer.3} parent=11 // pred_fallthru
          _
        // Predicated region
        $region25: #{encoder_layer.3} parent=11 // pred_check
          %p416 = pneg %p231
        $region26: #{encoder_layer.3} parent=11 // pred_check_branch
          %418 = sbr.rel (%p416) target = $region28
        $region27: #{encoder_layer.3} parent=11 // pred_region
          _
        $region28: #{encoder_layer.3} parent=11 // pred_fallthru
          _
        // Predicated region
        $region29: #{encoder_layer.3} parent=11 // pred_check
          %p419 = pneg %p252
        $region30: #{encoder_layer.3} parent=11 // pred_check_branch
          %421 = sbr.rel (%p419) target = $region32
        $region31: #{encoder_layer.3} parent=11 // pred_region
          _
        $region32: #{encoder_layer.3} parent=11 // pred_fallthru
          _
        // Predicated region
        $region33: #{encoder_layer.3} parent=11 // pred_check
          %p422 = pneg %p273
        $region34: #{encoder_layer.3} parent=11 // pred_check_branch
          %424 = sbr.rel (%p422) target = $region36
        $region35: #{encoder_layer.3} parent=11 // pred_region
          _
        $region36: #{encoder_layer.3} parent=11 // pred_fallthru
          _
        // Predicated region
        $region37: #{encoder_layer.3} parent=11 // pred_check
          %p425 = pneg %p294
        $region38: #{encoder_layer.3} parent=11 // pred_check_branch
          %427 = sbr.rel (%p425) target = $region40
        $region39: #{encoder_layer.3} parent=11 // pred_region
          _
        $region40: #{encoder_layer.3} parent=11 // pred_fallthru
          _
        // Predicated region
        $region41: #{encoder_layer.3} parent=11 // pred_check
          %p428 = pneg %p315
        $region42: #{encoder_layer.3} parent=11 // pred_check_branch
          %430 = sbr.rel (%p428) target = $region44
        $region43: #{encoder_layer.3} parent=11 // pred_region
          _
        $region44: #{encoder_layer.3} parent=11 // pred_fallthru
          _
        // Predicated region
        $region45: #{encoder_layer.3} parent=11 // pred_check
          %p431 = pneg %p336
        $region46: #{encoder_layer.3} parent=11 // pred_check_branch
          %433 = sbr.rel (%p431) target = $region48
        $region47: #{encoder_layer.3} parent=11 // pred_region
          _
        $region48: #{encoder_layer.3} parent=11 // pred_fallthru
          _
      $region12: #{encoder_layer.3} parent=5 // pred_fallthru
        _
      %p434 = scmp.lt.s32.totalorder %s27, 2
      // Predicated region
      $region49: #{encoder_layer.3} parent=5 // pred_check
        %p435 = pneg %p434
      $region50: #{encoder_layer.3} parent=5 // pred_check_branch
        %437 = sbr.rel (%p435) target = $region52
      $region51: #{encoder_layer.3} parent=5 // pred_region
        // Predicated region
        $region53: #{encoder_layer.3} parent=51 // pred_check
          %p438 = pneg %p61
        $region54: #{encoder_layer.3} parent=51 // pred_check_branch
          %440 = sbr.rel (%p438) target = $region56
        $region55: #{encoder_layer.3} parent=51 // pred_region
          %p441 = scmp.lt.s32.totalorder %s34, 1
          %s442 = scalar_select %p441, %s34, 1
          %p443 = scmp.lt.s32.totalorder %s35, 0
          %s444 = scalar_select %p443, %s35, 0
          %s445 = sadd.s32 %s444, %s442
          %s446 = smul.addr %s445, 8
          %s447 = scalar_lea.vmem %s0, %s446
        $region56: #{encoder_layer.3} parent=51 // pred_fallthru
          _
        // Predicated region
        $region57: #{encoder_layer.3} parent=51 // pred_check
          %p448 = pneg %p89
        $region58: #{encoder_layer.3} parent=51 // pred_check_branch
          %450 = sbr.rel (%p448) target = $region60
        $region59: #{encoder_layer.3} parent=51 // pred_region
          %p451 = scmp.lt.s32.totalorder %s34, 1
          %s452 = scalar_select %p451, %s34, 1
          %p453 = scmp.lt.s32.totalorder %s35, 0
          %s454 = scalar_select %p453, %s35, 0
          %s455 = smul.addr %s452, 4
          %s456 = sadd.s32 %s454, %s455
          %s457 = smul.addr %s456, 8
          %s458 = scalar_lea.vmem %s1, %s457
        $region60: #{encoder_layer.3} parent=51 // pred_fallthru
          _
        // Predicated region
        $region61: #{encoder_layer.3} parent=51 // pred_check
          %p459 = pneg %p115
        $region62: #{encoder_layer.3} parent=51 // pred_check_branch
          %461 = sbr.rel (%p459) target = $region64
        $region63: #{encoder_layer.3} parent=51 // pred_region
          %p462 = scmp.lt.s32.totalorder %s34, 1
          %s463 = scalar_select %p462, %s34, 1
          %s464 = smul.addr %s463, 4
          %s465 = smul.addr %s464, 8
          %s466 = scalar_lea.vmem %s2, %s465
        $region64: #{encoder_layer.3} parent=51 // pred_fallthru
          _
        // Predicated region
        $region65: #{encoder_layer.3} parent=51 // pred_check
          %p467 = pneg %p141
        $region66: #{encoder_layer.3} parent=51 // pred_check_branch
          %469 = sbr.rel (%p467) target = $region68
        $region67: #{encoder_layer.3} parent=51 // pred_region
          %p470 = scmp.lt.s32.totalorder %s34, 1
          %s471 = scalar_select %p470, %s34, 1
          %s472 = smul.addr %s471, 4
          %s473 = smul.addr %s472, 8
          %s474 = scalar_lea.vmem %s3, %s473
        $region68: #{encoder_layer.3} parent=51 // pred_fallthru
          _
      $region52: #{encoder_layer.3} parent=5 // pred_fallthru
        _
      %p475 = scmp.le.s32.totalorder 1, %s27
      %p476 = scmp.lt.s32.totalorder %s27, 3
      %p477 = pnand %p475, %p476
      %p478 = pneg %p477
      // Predicated region
      $region69: #{encoder_layer.3} parent=5 // pred_check
        _
      $region70: #{encoder_layer.3} parent=5 // pred_check_branch
        %480 = sbr.rel (%p477) target = $region72
      $region71: #{encoder_layer.3} parent=5 // pred_region
        %s481 = ssub.s32 %s27, 1
        %p482 = scmp.lt.s32.totalorder %s36, 1
        %s483 = scalar_select %p482, %s36, 1
        %p484 = scmp.lt.s32.totalorder %s37, 0
        %s485 = scalar_select %p484, %s37, 0
        %s486 = sadd.s32 %s485, %s483
        %s487 = smul.addr %s486, 8
        %s488 = scalar_lea.vmem %s0, %s487
        %p489 = pneg %p67
        %p490 = pneg %p64
        %p491 = scmp.lt.s32.totalorder %s36, 1
        %s492 = scalar_select %p491, %s36, 1
        %p493 = scmp.lt.s32.totalorder %s37, 0
        %s494 = scalar_select %p493, %s37, 0
        %s495 = smul.addr %s492, 4
        %s496 = sadd.s32 %s494, %s495
        %s497 = smul.addr %s496, 8
        %s498 = scalar_lea.vmem %s1, %s497
        %p499 = pneg %p95
        %p500 = pneg %p92
        %p501 = scmp.lt.s32.totalorder %s36, 1
        %s502 = scalar_select %p501, %s36, 1
        %s503 = smul.addr %s502, 4
        %s504 = smul.addr %s503, 8
        %s505 = scalar_lea.vmem %s2, %s504
        %p506 = pneg %p121
        %p507 = pneg %p118
        %p508 = scmp.lt.s32.totalorder %s36, 1
        %s509 = scalar_select %p508, %s36, 1
        %s510 = smul.addr %s509, 4
        %s511 = smul.addr %s510, 8
        %s512 = scalar_lea.vmem %s3, %s511
        %p513 = pneg %p147
        %p514 = pneg %p144
        %p515 = pneg %p168
        %p516 = pneg %p165
        %p517 = pneg %p189
        %p518 = pneg %p186
        %p519 = pneg %p210
        %p520 = pneg %p207
        %p521 = pneg %p231
        %p522 = pneg %p228
        %p523 = pneg %p252
        %p524 = pneg %p249
        %p525 = pneg %p273
        %p526 = pneg %p270
        %p527 = pneg %p294
        %p528 = pneg %p291
        %p529 = pneg %p315
        %p530 = pneg %p312
        %p531 = pneg %p336
        %p532 = pneg %p333
        %p533 = pneg %p364
        %p534 = pneg %p361
        %s535 = sand.u32 %s351, 1
        %s536 = scalar_lea.sflag [#allocation3], %s535
        %s537 = sand.u32 %s351, 1
        %s538 = smul.addr %s537, 8
        %s539 = scalar_lea.vmem [#allocation2], %s538
        %p540 = pneg %p392
        %p541 = pneg %p389
        %s542 = sand.u32 %s379, 1
        %s543 = scalar_lea.sflag [#allocation5], %s542
        %s544 = sand.u32 %s379, 1
        %s545 = smul.addr %s544, 32
        %s546 = scalar_lea.vmem [#allocation4], %s545
        %p547 = scmp.lt.s32.totalorder %s36, 1
        %s548 = scalar_select %p547, %s36, 1
        %p549 = scmp.lt.s32.totalorder %s37, 0
        %s550 = scalar_select %p549, %s37, 0
        %s551 = sadd.s32 %s550, %s548
        %s552 = smul.addr %s551, 8
        %s553 = scalar_lea.vmem %s0, %s552
        %p554 = scmp.lt.s32.totalorder %s36, 1
        %s555 = scalar_select %p554, %s36, 1
        %p556 = scmp.lt.s32.totalorder %s37, 0
        %s557 = scalar_select %p556, %s37, 0
        %s558 = smul.addr %s555, 4
        %s559 = sadd.s32 %s557, %s558
        %s560 = smul.addr %s559, 8
        %s561 = scalar_lea.vmem %s1, %s560
        %p562 = scmp.lt.s32.totalorder %s36, 1
        %s563 = scalar_select %p562, %s36, 1
        %s564 = smul.addr %s563, 4
        %s565 = smul.addr %s564, 8
        %s566 = scalar_lea.vmem %s2, %s565
        %p567 = scmp.lt.s32.totalorder %s36, 1
        %s568 = scalar_select %p567, %s36, 1
        %s569 = smul.addr %s568, 4
        %s570 = smul.addr %s569, 8
        %s571 = scalar_lea.vmem %s3, %s570
        %v572 = vld [vmem:[%s553] sm:$0xff]
        %v573 = vld [vmem:[%s561] sm:$0xff]
        %v574 = vld [vmem:[%s561 + $0x8] sm:$0xff]
        %v575 = vld [vmem:[%s561 + $0x10] sm:$0xff]
        %v576 = vld [vmem:[%s561 + $0x18] sm:$0xff]
        %v577 = vld [vmem:[%s566] sm:$0xff]
        %v578 = vld [vmem:[%s566 + $0x8] sm:$0xff]
        %v579 = vld [vmem:[%s566 + $0x10] sm:$0xff]
        %v580 = vld [vmem:[%s566 + $0x18] sm:$0xff]
        %v581 = vld [vmem:[%s571] sm:$0xff]
        %v582 = vld [vmem:[%s571 + $0x8] sm:$0xff]
        %v583 = vld [vmem:[%s571 + $0x10] sm:$0xff]
        %v584 = vld [vmem:[%s571 + $0x18] sm:$0xff]
        %vm585 = vcmask 64512
        %v587 = vsel %vm585, %v573, 0
        %v590 = vsel %vm585, %v577, 0
        %592 = vmatprep.subr.mxu0 0.0
        %593 = vmatpush1.xpose.msra.mxu0 %v590
        %594 = vmatprep.subr.mxu0 0.0
        %595 = vmatpush1.xpose.msra.mxu0 0.0
        %596 = vmatprep.subr.mxu0 0.0
        %597 = vmatpush1.xpose.msra.mxu0 0.0
        %598 = vmatprep.subr.mxu0 0.0
        %599 = vmatpush1.xpose.msra.mxu0 0.0
        %600 = vmatprep.subr.mxu0 0.0
        %601 = vmatpush1.xpose.msra.mxu0 0.0
        %602 = vmatprep.subr.mxu0 0.0
        %603 = vmatpush1.xpose.msra.mxu0 0.0
        %604 = vmatprep.subr.mxu0 0.0
        %605 = vmatpush1.xpose.msra.mxu0 0.0
        %606 = vmatprep.subr.mxu0 0.0
        %607 = vmatpush1.xpose.msra.mxu0 0.0
        %608 = vmatprep.subr.mxu0 0.0
        %609 = vmatpush1.xpose.msra.mxu0 0.0
        %610 = vmatprep.subr.mxu0 0.0
        %611 = vmatpush1.xpose.msra.mxu0 0.0
        %612 = vmatprep.subr.mxu0 0.0
        %613 = vmatpush1.xpose.msra.mxu0 0.0
        %614 = vmatprep.subr.mxu0 0.0
        %615 = vmatpush1.xpose.msra.mxu0 0.0
        %616 = vmatprep.subr.mxu0 0.0
        %617 = vmatpush1.xpose.msra.mxu0 0.0
        %618 = vmatprep.subr.mxu0 0.0
        %619 = vmatpush1.xpose.msra.mxu0 0.0
        %620 = vmatprep.subr.mxu0 0.0
        %621 = vmatpush1.xpose.msra.mxu0 0.0
        %622 = vmatprep.subr.mxu0 0.0
        %623 = vmatpush1.xpose.msra.mxu0 0.0
        %624 = vmatprep.subr.mxu0 0.0
        %625 = vmatpush1.xpose.msra.mxu0 0.0
        %626 = vmatprep.subr.mxu0 0.0
        %627 = vmatpush1.xpose.msra.mxu0 0.0
        %628 = vmatprep.subr.mxu0 0.0
        %629 = vmatpush1.xpose.msra.mxu0 0.0
        %630 = vmatprep.subr.mxu0 0.0
        %631 = vmatpush1.xpose.msra.mxu0 0.0
        %632 = vmatprep.subr.mxu0 0.0
        %633 = vmatpush1.xpose.msra.mxu0 0.0
        %634 = vmatprep.subr.mxu0 0.0
        %635 = vmatpush1.xpose.msra.mxu0 0.0
        %636 = vmatprep.subr.mxu0 0.0
        %637 = vmatpush1.xpose.msra.mxu0 0.0
        %638 = vmatprep.subr.mxu0 0.0
        %639 = vmatpush1.xpose.msra.mxu0 0.0
        %640 = vmatprep.subr.mxu0 0.0
        %641 = vmatpush1.xpose.msra.mxu0 0.0
        %642 = vmatprep.subr.mxu0 0.0
        %643 = vmatpush1.xpose.msra.mxu0 0.0
        %644 = vmatprep.subr.mxu0 0.0
        %645 = vmatpush1.xpose.msra.mxu0 0.0
        %646 = vmatprep.subr.mxu0 0.0
        %647 = vmatpush1.xpose.msra.mxu0 0.0
        %648 = vmatprep.subr.mxu0 0.0
        %649 = vmatpush1.xpose.msra.mxu0 0.0
        %650 = vmatprep.subr.mxu0 0.0
        %651 = vmatpush1.xpose.msra.mxu0 0.0
        %652 = vmatprep.subr.mxu0 0.0
        %653 = vmatpush1.xpose.msra.mxu0 0.0
        %654 = vmatprep.subr.mxu0 0.0
        %655 = vmatpush1.xpose.msra.mxu0 0.0
        %656 = vmatprep.mubr.f32.mxu0 0.0
        %657 = vmatmul.mubr.f32.gmra.mrb[0].mxu0 %v587
        %v658 = vpop.f32.mrb[0].mxu0
        %v659 = vadd.f32 0.0, %v658
        %v660 = vpop.f32.mrb[0].mxu0
        %661 = vdwg.mxu0
        %v663 = vsel %vm585, %v574, 0
        %v666 = vsel %vm585, %v578, 0
        %668 = vmatprep.subr.mxu0 0.0
        %669 = vmatpush1.xpose.msra.mxu0 %v666
        %670 = vmatprep.subr.mxu0 0.0
        %671 = vmatpush1.xpose.msra.mxu0 0.0
        %672 = vmatprep.subr.mxu0 0.0
        %673 = vmatpush1.xpose.msra.mxu0 0.0
        %674 = vmatprep.subr.mxu0 0.0
        %675 = vmatpush1.xpose.msra.mxu0 0.0
        %676 = vmatprep.subr.mxu0 0.0
        %677 = vmatpush1.xpose.msra.mxu0 0.0
        %678 = vmatprep.subr.mxu0 0.0
        %679 = vmatpush1.xpose.msra.mxu0 0.0
        %680 = vmatprep.subr.mxu0 0.0
        %681 = vmatpush1.xpose.msra.mxu0 0.0
        %682 = vmatprep.subr.mxu0 0.0
        %683 = vmatpush1.xpose.msra.mxu0 0.0
        %684 = vmatprep.subr.mxu0 0.0
        %685 = vmatpush1.xpose.msra.mxu0 0.0
        %686 = vmatprep.subr.mxu0 0.0
        %687 = vmatpush1.xpose.msra.mxu0 0.0
        %688 = vmatprep.subr.mxu0 0.0
        %689 = vmatpush1.xpose.msra.mxu0 0.0
        %690 = vmatprep.subr.mxu0 0.0
        %691 = vmatpush1.xpose.msra.mxu0 0.0
        %692 = vmatprep.subr.mxu0 0.0
        %693 = vmatpush1.xpose.msra.mxu0 0.0
        %694 = vmatprep.subr.mxu0 0.0
        %695 = vmatpush1.xpose.msra.mxu0 0.0
        %696 = vmatprep.subr.mxu0 0.0
        %697 = vmatpush1.xpose.msra.mxu0 0.0
        %698 = vmatprep.subr.mxu0 0.0
        %699 = vmatpush1.xpose.msra.mxu0 0.0
        %700 = vmatprep.subr.mxu0 0.0
        %701 = vmatpush1.xpose.msra.mxu0 0.0
        %702 = vmatprep.subr.mxu0 0.0
        %703 = vmatpush1.xpose.msra.mxu0 0.0
        %704 = vmatprep.subr.mxu0 0.0
        %705 = vmatpush1.xpose.msra.mxu0 0.0
        %706 = vmatprep.subr.mxu0 0.0
        %707 = vmatpush1.xpose.msra.mxu0 0.0
        %708 = vmatprep.subr.mxu0 0.0
        %709 = vmatpush1.xpose.msra.mxu0 0.0
        %710 = vmatprep.subr.mxu0 0.0
        %711 = vmatpush1.xpose.msra.mxu0 0.0
        %712 = vmatprep.subr.mxu0 0.0
        %713 = vmatpush1.xpose.msra.mxu0 0.0
        %714 = vmatprep.subr.mxu0 0.0
        %715 = vmatpush1.xpose.msra.mxu0 0.0
        %716 = vmatprep.subr.mxu0 0.0
        %717 = vmatpush1.xpose.msra.mxu0 0.0
        %718 = vmatprep.subr.mxu0 0.0
        %719 = vmatpush1.xpose.msra.mxu0 0.0
        %720 = vmatprep.subr.mxu0 0.0
        %721 = vmatpush1.xpose.msra.mxu0 0.0
        %722 = vmatprep.subr.mxu0 0.0
        %723 = vmatpush1.xpose.msra.mxu0 0.0
        %724 = vmatprep.subr.mxu0 0.0
        %725 = vmatpush1.xpose.msra.mxu0 0.0
        %726 = vmatprep.subr.mxu0 0.0
        %727 = vmatpush1.xpose.msra.mxu0 0.0
        %728 = vmatprep.subr.mxu0 0.0
        %729 = vmatpush1.xpose.msra.mxu0 0.0
        %730 = vmatprep.subr.mxu0 0.0
        %731 = vmatpush1.xpose.msra.mxu0 0.0
        %732 = vmatprep.mubr.f32.mxu0 0.0
        %733 = vmatmul.mubr.f32.gmra.mrb[0].mxu0 %v663
        %v734 = vpop.f32.mrb[0].mxu0
        %v735 = vadd.f32 0.0, %v734
        %v736 = vpop.f32.mrb[0].mxu0
        %737 = vdwg.mxu0
        %v739 = vsel %vm585, %v575, 0
        %v742 = vsel %vm585, %v579, 0
        %744 = vmatprep.subr.mxu0 0.0
        %745 = vmatpush1.xpose.msra.mxu0 %v742
        %746 = vmatprep.subr.mxu0 0.0
        %747 = vmatpush1.xpose.msra.mxu0 0.0
        %748 = vmatprep.subr.mxu0 0.0
        %749 = vmatpush1.xpose.msra.mxu0 0.0
        %750 = vmatprep.subr.mxu0 0.0
        %751 = vmatpush1.xpose.msra.mxu0 0.0
        %752 = vmatprep.subr.mxu0 0.0
        %753 = vmatpush1.xpose.msra.mxu0 0.0
        %754 = vmatprep.subr.mxu0 0.0
        %755 = vmatpush1.xpose.msra.mxu0 0.0
        %756 = vmatprep.subr.mxu0 0.0
        %757 = vmatpush1.xpose.msra.mxu0 0.0
        %758 = vmatprep.subr.mxu0 0.0
        %759 = vmatpush1.xpose.msra.mxu0 0.0
        %760 = vmatprep.subr.mxu0 0.0
        %761 = vmatpush1.xpose.msra.mxu0 0.0
        %762 = vmatprep.subr.mxu0 0.0
        %763 = vmatpush1.xpose.msra.mxu0 0.0
        %764 = vmatprep.subr.mxu0 0.0
        %765 = vmatpush1.xpose.msra.mxu0 0.0
        %766 = vmatprep.subr.mxu0 0.0
        %767 = vmatpush1.xpose.msra.mxu0 0.0
        %768 = vmatprep.subr.mxu0 0.0
        %769 = vmatpush1.xpose.msra.mxu0 0.0
        %770 = vmatprep.subr.mxu0 0.0
        %771 = vmatpush1.xpose.msra.mxu0 0.0
        %772 = vmatprep.subr.mxu0 0.0
        %773 = vmatpush1.xpose.msra.mxu0 0.0
        %774 = vmatprep.subr.mxu0 0.0
        %775 = vmatpush1.xpose.msra.mxu0 0.0
        %776 = vmatprep.subr.mxu0 0.0
        %777 = vmatpush1.xpose.msra.mxu0 0.0
        %778 = vmatprep.subr.mxu0 0.0
        %779 = vmatpush1.xpose.msra.mxu0 0.0
        %780 = vmatprep.subr.mxu0 0.0
        %781 = vmatpush1.xpose.msra.mxu0 0.0
        %782 = vmatprep.subr.mxu0 0.0
        %783 = vmatpush1.xpose.msra.mxu0 0.0
        %784 = vmatprep.subr.mxu0 0.0
        %785 = vmatpush1.xpose.msra.mxu0 0.0
        %786 = vmatprep.subr.mxu0 0.0
        %787 = vmatpush1.xpose.msra.mxu0 0.0
        %788 = vmatprep.subr.mxu0 0.0
        %789 = vmatpush1.xpose.msra.mxu0 0.0
        %790 = vmatprep.subr.mxu0 0.0
        %791 = vmatpush1.xpose.msra.mxu0 0.0
        %792 = vmatprep.subr.mxu0 0.0
        %793 = vmatpush1.xpose.msra.mxu0 0.0
        %794 = vmatprep.subr.mxu0 0.0
        %795 = vmatpush1.xpose.msra.mxu0 0.0
        %796 = vmatprep.subr.mxu0 0.0
        %797 = vmatpush1.xpose.msra.mxu0 0.0
        %798 = vmatprep.subr.mxu0 0.0
        %799 = vmatpush1.xpose.msra.mxu0 0.0
        %800 = vmatprep.subr.mxu0 0.0
        %801 = vmatpush1.xpose.msra.mxu0 0.0
        %802 = vmatprep.subr.mxu0 0.0
        %803 = vmatpush1.xpose.msra.mxu0 0.0
        %804 = vmatprep.subr.mxu0 0.0
        %805 = vmatpush1.xpose.msra.mxu0 0.0
        %806 = vmatprep.subr.mxu0 0.0
        %807 = vmatpush1.xpose.msra.mxu0 0.0
        %808 = vmatprep.mubr.f32.mxu0 0.0
        %809 = vmatmul.mubr.f32.gmra.mrb[0].mxu0 %v739
        %v810 = vpop.f32.mrb[0].mxu0
        %v811 = vadd.f32 0.0, %v810
        %v812 = vpop.f32.mrb[0].mxu0
        %813 = vdwg.mxu0
        %v815 = vsel %vm585, %v576, 0
        %v818 = vsel %vm585, %v580, 0
        %820 = vmatprep.subr.mxu0 0.0
        %821 = vmatpush1.xpose.msra.mxu0 %v818
        %822 = vmatprep.subr.mxu0 0.0
        %823 = vmatpush1.xpose.msra.mxu0 0.0
        %824 = vmatprep.subr.mxu0 0.0
        %825 = vmatpush1.xpose.msra.mxu0 0.0
        %826 = vmatprep.subr.mxu0 0.0
        %827 = vmatpush1.xpose.msra.mxu0 0.0
        %828 = vmatprep.subr.mxu0 0.0
        %829 = vmatpush1.xpose.msra.mxu0 0.0
        %830 = vmatprep.subr.mxu0 0.0
        %831 = vmatpush1.xpose.msra.mxu0 0.0
        %832 = vmatprep.subr.mxu0 0.0
        %833 = vmatpush1.xpose.msra.mxu0 0.0
        %834 = vmatprep.subr.mxu0 0.0
        %835 = vmatpush1.xpose.msra.mxu0 0.0
        %836 = vmatprep.subr.mxu0 0.0
        %837 = vmatpush1.xpose.msra.mxu0 0.0
        %838 = vmatprep.subr.mxu0 0.0
        %839 = vmatpush1.xpose.msra.mxu0 0.0
        %840 = vmatprep.subr.mxu0 0.0
        %841 = vmatpush1.xpose.msra.mxu0 0.0
        %842 = vmatprep.subr.mxu0 0.0
        %843 = vmatpush1.xpose.msra.mxu0 0.0
        %844 = vmatprep.subr.mxu0 0.0
        %845 = vmatpush1.xpose.msra.mxu0 0.0
        %846 = vmatprep.subr.mxu0 0.0
        %847 = vmatpush1.xpose.msra.mxu0 0.0
        %848 = vmatprep.subr.mxu0 0.0
        %849 = vmatpush1.xpose.msra.mxu0 0.0
        %850 = vmatprep.subr.mxu0 0.0
        %851 = vmatpush1.xpose.msra.mxu0 0.0
        %852 = vmatprep.subr.mxu0 0.0
        %853 = vmatpush1.xpose.msra.mxu0 0.0
        %854 = vmatprep.subr.mxu0 0.0
        %855 = vmatpush1.xpose.msra.mxu0 0.0
        %856 = vmatprep.subr.mxu0 0.0
        %857 = vmatpush1.xpose.msra.mxu0 0.0
        %858 = vmatprep.subr.mxu0 0.0
        %859 = vmatpush1.xpose.msra.mxu0 0.0
        %860 = vmatprep.subr.mxu0 0.0
        %861 = vmatpush1.xpose.msra.mxu0 0.0
        %862 = vmatprep.subr.mxu0 0.0
        %863 = vmatpush1.xpose.msra.mxu0 0.0
        %864 = vmatprep.subr.mxu0 0.0
        %865 = vmatpush1.xpose.msra.mxu0 0.0
        %866 = vmatprep.subr.mxu0 0.0
        %867 = vmatpush1.xpose.msra.mxu0 0.0
        %868 = vmatprep.subr.mxu0 0.0
        %869 = vmatpush1.xpose.msra.mxu0 0.0
        %870 = vmatprep.subr.mxu0 0.0
        %871 = vmatpush1.xpose.msra.mxu0 0.0
        %872 = vmatprep.subr.mxu0 0.0
        %873 = vmatpush1.xpose.msra.mxu0 0.0
        %874 = vmatprep.subr.mxu0 0.0
        %875 = vmatpush1.xpose.msra.mxu0 0.0
        %876 = vmatprep.subr.mxu0 0.0
        %877 = vmatpush1.xpose.msra.mxu0 0.0
        %878 = vmatprep.subr.mxu0 0.0
        %879 = vmatpush1.xpose.msra.mxu0 0.0
        %880 = vmatprep.subr.mxu0 0.0
        %881 = vmatpush1.xpose.msra.mxu0 0.0
        %882 = vmatprep.subr.mxu0 0.0
        %883 = vmatpush1.xpose.msra.mxu0 0.0
        %884 = vmatprep.mubr.f32.mxu0 0.0
        %885 = vmatmul.mubr.f32.gmra.mrb[0].mxu0 %v815
        %v886 = vpop.f32.mrb[0].mxu0
        %v887 = vadd.f32 0.0, %v886
        %v888 = vpop.f32.mrb[0].mxu0
        %889 = vdwg.mxu0
        %v890 = vmul.f32 %v659, 0.17677669
        %v891 = vmul.f32 %v735, 0.17677669
        %v892 = vmul.f32 %v811, 0.17677669
        %v893 = vmul.f32 %v887, 0.17677669
        %v894 = vsel %vm585, %v890, -inf
        %895 = vmax.xlane.f32.xlu0 %v894
        %v896 = vpop.xlane.xlu0 %895
        %v897 = vsel %vm585, %v891, -inf
        %898 = vmax.xlane.f32.xlu0 %v897
        %v899 = vpop.xlane.xlu0 %898
        %v900 = vsel %vm585, %v892, -inf
        %901 = vmax.xlane.f32.xlu0 %v900
        %v902 = vpop.xlane.xlu0 %901
        %v903 = vsel %vm585, %v893, -inf
        %904 = vmax.xlane.f32.xlu0 %v903
        %v905 = vpop.xlane.xlu0 %904
        %v906 = vsub.f32 %v890, %v896
        %v907 = vsub.f32 %v891, %v899
        %v908 = vsub.f32 %v892, %v902
        %v909 = vsub.f32 %v893, %v905
        %v910 = vmul.f32 %v906, 1.442695
        %v911 = vpow.pop %v910
        %v912 = vmul.f32 %v907, 1.442695
        %v913 = vpow.pop %v912
        %v914 = vmul.f32 %v908, 1.442695
        %v915 = vpow.pop %v914
        %v916 = vmul.f32 %v909, 1.442695
        %v917 = vpow.pop %v916
        %v918 = vsel %vm585, %v911, 0.0
        %919 = vadd.xlane.f32.xlu0 %v918
        %v920 = vpop.xlane.xlu0 %919
        %v921 = vsel %vm585, %v913, 0.0
        %922 = vadd.xlane.f32.xlu0 %v921
        %v923 = vpop.xlane.xlu0 %922
        %v924 = vsel %vm585, %v915, 0.0
        %925 = vadd.xlane.f32.xlu0 %v924
        %v926 = vpop.xlane.xlu0 %925
        %v927 = vsel %vm585, %v917, 0.0
        %928 = vadd.xlane.f32.xlu0 %v927
        %v929 = vpop.xlane.xlu0 %928
        %v930 = vrcp.pop %v920
        %v931 = vrcp.pop %v923
        %v932 = vrcp.pop %v926
        %v933 = vrcp.pop %v929
        %v934 = vmul.f32 %v911, %v930
        %v935 = vmul.f32 %v913, %v931
        %v936 = vmul.f32 %v915, %v932
        %v937 = vmul.f32 %v917, %v933
        %938 = vst.msk [vmem:[%s546] sm:$0xff] %vm585, %v934
        %939 = vst.msk [vmem:[%s546 + $0x8] sm:$0xff] %vm585, %v935
        %940 = vst.msk [vmem:[%s546 + $0x10] sm:$0xff] %vm585, %v936
        %941 = vst.msk [vmem:[%s546 + $0x18] sm:$0xff] %vm585, %v937
        %v943 = vsel %vm585, %v934, 0
        %945 = vmatprep.subr.mxu0 0.0
        %946 = vmatpush1.msra.mxu0 %v581
        %947 = vmatprep.subr.mxu0 0.0
        %948 = vmatpush1.msra.mxu0 0.0
        %949 = vmatprep.subr.mxu0 0.0
        %950 = vmatpush1.msra.mxu0 0.0
        %951 = vmatprep.subr.mxu0 0.0
        %952 = vmatpush1.msra.mxu0 0.0
        %953 = vmatprep.subr.mxu0 0.0
        %954 = vmatpush1.msra.mxu0 0.0
        %955 = vmatprep.subr.mxu0 0.0
        %956 = vmatpush1.msra.mxu0 0.0
        %957 = vmatprep.subr.mxu0 0.0
        %958 = vmatpush1.msra.mxu0 0.0
        %959 = vmatprep.subr.mxu0 0.0
        %960 = vmatpush1.msra.mxu0 0.0
        %961 = vmatprep.subr.mxu0 0.0
        %962 = vmatpush1.msra.mxu0 0.0
        %963 = vmatprep.subr.mxu0 0.0
        %964 = vmatpush1.msra.mxu0 0.0
        %965 = vmatprep.subr.mxu0 0.0
        %966 = vmatpush1.msra.mxu0 0.0
        %967 = vmatprep.subr.mxu0 0.0
        %968 = vmatpush1.msra.mxu0 0.0
        %969 = vmatprep.subr.mxu0 0.0
        %970 = vmatpush1.msra.mxu0 0.0
        %971 = vmatprep.subr.mxu0 0.0
        %972 = vmatpush1.msra.mxu0 0.0
        %973 = vmatprep.subr.mxu0 0.0
        %974 = vmatpush1.msra.mxu0 0.0
        %975 = vmatprep.subr.mxu0 0.0
        %976 = vmatpush1.msra.mxu0 0.0
        %977 = vmatprep.subr.mxu0 0.0
        %978 = vmatpush1.msra.mxu0 0.0
        %979 = vmatprep.subr.mxu0 0.0
        %980 = vmatpush1.msra.mxu0 0.0
        %981 = vmatprep.subr.mxu0 0.0
        %982 = vmatpush1.msra.mxu0 0.0
        %983 = vmatprep.subr.mxu0 0.0
        %984 = vmatpush1.msra.mxu0 0.0
        %985 = vmatprep.subr.mxu0 0.0
        %986 = vmatpush1.msra.mxu0 0.0
        %987 = vmatprep.subr.mxu0 0.0
        %988 = vmatpush1.msra.mxu0 0.0
        %989 = vmatprep.subr.mxu0 0.0
        %990 = vmatpush1.msra.mxu0 0.0
        %991 = vmatprep.subr.mxu0 0.0
        %992 = vmatpush1.msra.mxu0 0.0
        %993 = vmatprep.subr.mxu0 0.0
        %994 = vmatpush1.msra.mxu0 0.0
        %995 = vmatprep.subr.mxu0 0.0
        %996 = vmatpush1.msra.mxu0 0.0
        %997 = vmatprep.subr.mxu0 0.0
        %998 = vmatpush1.msra.mxu0 0.0
        %999 = vmatprep.subr.mxu0 0.0
        %1000 = vmatpush1.msra.mxu0 0.0
        %1001 = vmatprep.subr.mxu0 0.0
        %1002 = vmatpush1.msra.mxu0 0.0
        %1003 = vmatprep.subr.mxu0 0.0
        %1004 = vmatpush1.msra.mxu0 0.0
        %1005 = vmatprep.subr.mxu0 0.0
        %1006 = vmatpush1.msra.mxu0 0.0
        %1007 = vmatprep.subr.mxu0 0.0
        %1008 = vmatpush1.msra.mxu0 0.0
        %1009 = vmatprep.mubr.f32.mxu0 0.0
        %1010 = vmatmul.mubr.f32.gmra.mrb[0].mxu0 %v943
        %v1011 = vpop.f32.mrb[0].mxu0
        %v1012 = vadd.f32 0.0, %v1011
        %v1013 = vpop.f32.mrb[0].mxu0
        %1014 = vdwg.mxu0
        %v1016 = vsel %vm585, %v935, 0
        %1018 = vmatprep.subr.mxu0 0.0
        %1019 = vmatpush1.msra.mxu0 %v582
        %1020 = vmatprep.subr.mxu0 0.0
        %1021 = vmatpush1.msra.mxu0 0.0
        %1022 = vmatprep.subr.mxu0 0.0
        %1023 = vmatpush1.msra.mxu0 0.0
        %1024 = vmatprep.subr.mxu0 0.0
        %1025 = vmatpush1.msra.mxu0 0.0
        %1026 = vmatprep.subr.mxu0 0.0
        %1027 = vmatpush1.msra.mxu0 0.0
        %1028 = vmatprep.subr.mxu0 0.0
        %1029 = vmatpush1.msra.mxu0 0.0
        %1030 = vmatprep.subr.mxu0 0.0
        %1031 = vmatpush1.msra.mxu0 0.0
        %1032 = vmatprep.subr.mxu0 0.0
        %1033 = vmatpush1.msra.mxu0 0.0
        %1034 = vmatprep.subr.mxu0 0.0
        %1035 = vmatpush1.msra.mxu0 0.0
        %1036 = vmatprep.subr.mxu0 0.0
        %1037 = vmatpush1.msra.mxu0 0.0
        %1038 = vmatprep.subr.mxu0 0.0
        %1039 = vmatpush1.msra.mxu0 0.0
        %1040 = vmatprep.subr.mxu0 0.0
        %1041 = vmatpush1.msra.mxu0 0.0
        %1042 = vmatprep.subr.mxu0 0.0
        %1043 = vmatpush1.msra.mxu0 0.0
        %1044 = vmatprep.subr.mxu0 0.0
        %1045 = vmatpush1.msra.mxu0 0.0
        %1046 = vmatprep.subr.mxu0 0.0
        %1047 = vmatpush1.msra.mxu0 0.0
        %1048 = vmatprep.subr.mxu0 0.0
        %1049 = vmatpush1.msra.mxu0 0.0
        %1050 = vmatprep.subr.mxu0 0.0
        %1051 = vmatpush1.msra.mxu0 0.0
        %1052 = vmatprep.subr.mxu0 0.0
        %1053 = vmatpush1.msra.mxu0 0.0
        %1054 = vmatprep.subr.mxu0 0.0
        %1055 = vmatpush1.msra.mxu0 0.0
        %1056 = vmatprep.subr.mxu0 0.0
        %1057 = vmatpush1.msra.mxu0 0.0
        %1058 = vmatprep.subr.mxu0 0.0
        %1059 = vmatpush1.msra.mxu0 0.0
        %1060 = vmatprep.subr.mxu0 0.0
        %1061 = vmatpush1.msra.mxu0 0.0
        %1062 = vmatprep.subr.mxu0 0.0
        %1063 = vmatpush1.msra.mxu0 0.0
        %1064 = vmatprep.subr.mxu0 0.0
        %1065 = vmatpush1.msra.mxu0 0.0
        %1066 = vmatprep.subr.mxu0 0.0
        %1067 = vmatpush1.msra.mxu0 0.0
        %1068 = vmatprep.subr.mxu0 0.0
        %1069 = vmatpush1.msra.mxu0 0.0
        %1070 = vmatprep.subr.mxu0 0.0
        %1071 = vmatpush1.msra.mxu0 0.0
        %1072 = vmatprep.subr.mxu0 0.0
        %1073 = vmatpush1.msra.mxu0 0.0
        %1074 = vmatprep.subr.mxu0 0.0
        %1075 = vmatpush1.msra.mxu0 0.0
        %1076 = vmatprep.subr.mxu0 0.0
        %1077 = vmatpush1.msra.mxu0 0.0
        %1078 = vmatprep.subr.mxu0 0.0
        %1079 = vmatpush1.msra.mxu0 0.0
        %1080 = vmatprep.subr.mxu0 0.0
        %1081 = vmatpush1.msra.mxu0 0.0
        %1082 = vmatprep.mubr.f32.mxu0 0.0
        %1083 = vmatmul.mubr.f32.gmra.mrb[0].mxu0 %v1016
        %v1084 = vpop.f32.mrb[0].mxu0
        %v1085 = vadd.f32 0.0, %v1084
        %v1086 = vpop.f32.mrb[0].mxu0
        %1087 = vdwg.mxu0
        %v1089 = vsel %vm585, %v936, 0
        %1091 = vmatprep.subr.mxu0 0.0
        %1092 = vmatpush1.msra.mxu0 %v583
        %1093 = vmatprep.subr.mxu0 0.0
        %1094 = vmatpush1.msra.mxu0 0.0
        %1095 = vmatprep.subr.mxu0 0.0
        %1096 = vmatpush1.msra.mxu0 0.0
        %1097 = vmatprep.subr.mxu0 0.0
        %1098 = vmatpush1.msra.mxu0 0.0
        %1099 = vmatprep.subr.mxu0 0.0
        %1100 = vmatpush1.msra.mxu0 0.0
        %1101 = vmatprep.subr.mxu0 0.0
        %1102 = vmatpush1.msra.mxu0 0.0
        %1103 = vmatprep.subr.mxu0 0.0
        %1104 = vmatpush1.msra.mxu0 0.0
        %1105 = vmatprep.subr.mxu0 0.0
        %1106 = vmatpush1.msra.mxu0 0.0
        %1107 = vmatprep.subr.mxu0 0.0
        %1108 = vmatpush1.msra.mxu0 0.0
        %1109 = vmatprep.subr.mxu0 0.0
        %1110 = vmatpush1.msra.mxu0 0.0
        %1111 = vmatprep.subr.mxu0 0.0
        %1112 = vmatpush1.msra.mxu0 0.0
        %1113 = vmatprep.subr.mxu0 0.0
        %1114 = vmatpush1.msra.mxu0 0.0
        %1115 = vmatprep.subr.mxu0 0.0
        %1116 = vmatpush1.msra.mxu0 0.0
        %1117 = vmatprep.subr.mxu0 0.0
        %1118 = vmatpush1.msra.mxu0 0.0
        %1119 = vmatprep.subr.mxu0 0.0
        %1120 = vmatpush1.msra.mxu0 0.0
        %1121 = vmatprep.subr.mxu0 0.0
        %1122 = vmatpush1.msra.mxu0 0.0
        %1123 = vmatprep.subr.mxu0 0.0
        %1124 = vmatpush1.msra.mxu0 0.0
        %1125 = vmatprep.subr.mxu0 0.0
        %1126 = vmatpush1.msra.mxu0 0.0
        %1127 = vmatprep.subr.mxu0 0.0
        %1128 = vmatpush1.msra.mxu0 0.0
        %1129 = vmatprep.subr.mxu0 0.0
        %1130 = vmatpush1.msra.mxu0 0.0
        %1131 = vmatprep.subr.mxu0 0.0
        %1132 = vmatpush1.msra.mxu0 0.0
        %1133 = vmatprep.subr.mxu0 0.0
        %1134 = vmatpush1.msra.mxu0 0.0
        %1135 = vmatprep.subr.mxu0 0.0
        %1136 = vmatpush1.msra.mxu0 0.0
        %1137 = vmatprep.subr.mxu0 0.0
        %1138 = vmatpush1.msra.mxu0 0.0
        %1139 = vmatprep.subr.mxu0 0.0
        %1140 = vmatpush1.msra.mxu0 0.0
        %1141 = vmatprep.subr.mxu0 0.0
        %1142 = vmatpush1.msra.mxu0 0.0
        %1143 = vmatprep.subr.mxu0 0.0
        %1144 = vmatpush1.msra.mxu0 0.0
        %1145 = vmatprep.subr.mxu0 0.0
        %1146 = vmatpush1.msra.mxu0 0.0
        %1147 = vmatprep.subr.mxu0 0.0
        %1148 = vmatpush1.msra.mxu0 0.0
        %1149 = vmatprep.subr.mxu0 0.0
        %1150 = vmatpush1.msra.mxu0 0.0
        %1151 = vmatprep.subr.mxu0 0.0
        %1152 = vmatpush1.msra.mxu0 0.0
        %1153 = vmatprep.subr.mxu0 0.0
        %1154 = vmatpush1.msra.mxu0 0.0
        %1155 = vmatprep.mubr.f32.mxu0 0.0
        %1156 = vmatmul.mubr.f32.gmra.mrb[0].mxu0 %v1089
        %v1157 = vpop.f32.mrb[0].mxu0
        %v1158 = vadd.f32 0.0, %v1157
        %v1159 = vpop.f32.mrb[0].mxu0
        %1160 = vdwg.mxu0
        %v1162 = vsel %vm585, %v937, 0
        %1164 = vmatprep.subr.mxu0 0.0
        %1165 = vmatpush1.msra.mxu0 %v584
        %1166 = vmatprep.subr.mxu0 0.0
        %1167 = vmatpush1.msra.mxu0 0.0
        %1168 = vmatprep.subr.mxu0 0.0
        %1169 = vmatpush1.msra.mxu0 0.0
        %1170 = vmatprep.subr.mxu0 0.0
        %1171 = vmatpush1.msra.mxu0 0.0
        %1172 = vmatprep.subr.mxu0 0.0
        %1173 = vmatpush1.msra.mxu0 0.0
        %1174 = vmatprep.subr.mxu0 0.0
        %1175 = vmatpush1.msra.mxu0 0.0
        %1176 = vmatprep.subr.mxu0 0.0
        %1177 = vmatpush1.msra.mxu0 0.0
        %1178 = vmatprep.subr.mxu0 0.0
        %1179 = vmatpush1.msra.mxu0 0.0
        %1180 = vmatprep.subr.mxu0 0.0
        %1181 = vmatpush1.msra.mxu0 0.0
        %1182 = vmatprep.subr.mxu0 0.0
        %1183 = vmatpush1.msra.mxu0 0.0
        %1184 = vmatprep.subr.mxu0 0.0
        %1185 = vmatpush1.msra.mxu0 0.0
        %1186 = vmatprep.subr.mxu0 0.0
        %1187 = vmatpush1.msra.mxu0 0.0
        %1188 = vmatprep.subr.mxu0 0.0
        %1189 = vmatpush1.msra.mxu0 0.0
        %1190 = vmatprep.subr.mxu0 0.0
        %1191 = vmatpush1.msra.mxu0 0.0
        %1192 = vmatprep.subr.mxu0 0.0
        %1193 = vmatpush1.msra.mxu0 0.0
        %1194 = vmatprep.subr.mxu0 0.0
        %1195 = vmatpush1.msra.mxu0 0.0
        %1196 = vmatprep.subr.mxu0 0.0
        %1197 = vmatpush1.msra.mxu0 0.0
        %1198 = vmatprep.subr.mxu0 0.0
        %1199 = vmatpush1.msra.mxu0 0.0
        %1200 = vmatprep.subr.mxu0 0.0
        %1201 = vmatpush1.msra.mxu0 0.0
        %1202 = vmatprep.subr.mxu0 0.0
        %1203 = vmatpush1.msra.mxu0 0.0
        %1204 = vmatprep.subr.mxu0 0.0
        %1205 = vmatpush1.msra.mxu0 0.0
        %1206 = vmatprep.subr.mxu0 0.0
        %1207 = vmatpush1.msra.mxu0 0.0
        %1208 = vmatprep.subr.mxu0 0.0
        %1209 = vmatpush1.msra.mxu0 0.0
        %1210 = vmatprep.subr.mxu0 0.0
        %1211 = vmatpush1.msra.mxu0 0.0
        %1212 = vmatprep.subr.mxu0 0.0
        %1213 = vmatpush1.msra.mxu0 0.0
        %1214 = vmatprep.subr.mxu0 0.0
        %1215 = vmatpush1.msra.mxu0 0.0
        %1216 = vmatprep.subr.mxu0 0.0
        %1217 = vmatpush1.msra.mxu0 0.0
        %1218 = vmatprep.subr.mxu0 0.0
        %1219 = vmatpush1.msra.mxu0 0.0
        %1220 = vmatprep.subr.mxu0 0.0
        %1221 = vmatpush1.msra.mxu0 0.0
        %1222 = vmatprep.subr.mxu0 0.0
        %1223 = vmatpush1.msra.mxu0 0.0
        %1224 = vmatprep.subr.mxu0 0.0
        %1225 = vmatpush1.msra.mxu0 0.0
        %1226 = vmatprep.subr.mxu0 0.0
        %1227 = vmatpush1.msra.mxu0 0.0
        %1228 = vmatprep.mubr.f32.mxu0 0.0
        %1229 = vmatmul.mubr.f32.gmra.mrb[0].mxu0 %v1162
        %v1230 = vpop.f32.mrb[0].mxu0
        %v1231 = vadd.f32 0.0, %v1230
        %v1232 = vpop.f32.mrb[0].mxu0
        %1233 = vdwg.mxu0
        %1235 = vrot.lane.b32.xlu0 %v1085, 8
        %v1236 = vpop.permute.xlu0 %1235
        %1239 = vrot.lane.b32.xlu0 %v1158, 16
        %v1240 = vpop.permute.xlu0 %1239
        %1243 = vrot.lane.b32.xlu0 %v1231, 24
        %v1244 = vpop.permute.xlu0 %1243
        %v1246 = vsel %vm585, %v1012, %v1236
        %vm1247 = vcmask 130048
        %v1248 = vsel %vm1247, %v1246, %v1240
        %vm1249 = vcmask 195584
        %v1250 = vsel %vm1249, %v1248, %v1244
        %v1251 = vld [vmem:[%s4] sm:$0xff]
        %v1252 = vld [vmem:[%s4 + $0x8] sm:$0xff]
        %v1253 = vld [vmem:[%s4 + $0x10] sm:$0xff]
        %v1254 = vld [vmem:[%s4 + $0x18] sm:$0xff]
        %vm1255 = vcmask 261120
        %v1257 = vsel %vm1255, %v1250, 0
        %1259 = vmatprep.subr.mxu0 0.0
        %1260 = vmatpush1.msra.mxu0 %v1251
        %1261 = vmatprep.subr.mxu0 0.0
        %1262 = vmatpush1.msra.mxu0 %v1252
        %1263 = vmatprep.subr.mxu0 0.0
        %1264 = vmatpush1.msra.mxu0 %v1253
        %1265 = vmatprep.subr.mxu0 0.0
        %1266 = vmatpush1.msra.mxu0 %v1254
        %1267 = vmatprep.subr.mxu0 0.0
        %1268 = vmatpush1.msra.mxu0 0.0
        %1269 = vmatprep.subr.mxu0 0.0
        %1270 = vmatpush1.msra.mxu0 0.0
        %1271 = vmatprep.subr.mxu0 0.0
        %1272 = vmatpush1.msra.mxu0 0.0
        %1273 = vmatprep.subr.mxu0 0.0
        %1274 = vmatpush1.msra.mxu0 0.0
        %1275 = vmatprep.subr.mxu0 0.0
        %1276 = vmatpush1.msra.mxu0 0.0
        %1277 = vmatprep.subr.mxu0 0.0
        %1278 = vmatpush1.msra.mxu0 0.0
        %1279 = vmatprep.subr.mxu0 0.0
        %1280 = vmatpush1.msra.mxu0 0.0
        %1281 = vmatprep.subr.mxu0 0.0
        %1282 = vmatpush1.msra.mxu0 0.0
        %1283 = vmatprep.subr.mxu0 0.0
        %1284 = vmatpush1.msra.mxu0 0.0
        %1285 = vmatprep.subr.mxu0 0.0
        %1286 = vmatpush1.msra.mxu0 0.0
        %1287 = vmatprep.subr.mxu0 0.0
        %1288 = vmatpush1.msra.mxu0 0.0
        %1289 = vmatprep.subr.mxu0 0.0
        %1290 = vmatpush1.msra.mxu0 0.0
        %1291 = vmatprep.subr.mxu0 0.0
        %1292 = vmatpush1.msra.mxu0 0.0
        %1293 = vmatprep.subr.mxu0 0.0
        %1294 = vmatpush1.msra.mxu0 0.0
        %1295 = vmatprep.subr.mxu0 0.0
        %1296 = vmatpush1.msra.mxu0 0.0
        %1297 = vmatprep.subr.mxu0 0.0
        %1298 = vmatpush1.msra.mxu0 0.0
        %1299 = vmatprep.subr.mxu0 0.0
        %1300 = vmatpush1.msra.mxu0 0.0
        %1301 = vmatprep.subr.mxu0 0.0
        %1302 = vmatpush1.msra.mxu0 0.0
        %1303 = vmatprep.subr.mxu0 0.0
        %1304 = vmatpush1.msra.mxu0 0.0
        %1305 = vmatprep.subr.mxu0 0.0
        %1306 = vmatpush1.msra.mxu0 0.0
        %1307 = vmatprep.subr.mxu0 0.0
        %1308 = vmatpush1.msra.mxu0 0.0
        %1309 = vmatprep.subr.mxu0 0.0
        %1310 = vmatpush1.msra.mxu0 0.0
        %1311 = vmatprep.subr.mxu0 0.0
        %1312 = vmatpush1.msra.mxu0 0.0
        %1313 = vmatprep.subr.mxu0 0.0
        %1314 = vmatpush1.msra.mxu0 0.0
        %1315 = vmatprep.subr.mxu0 0.0
        %1316 = vmatpush1.msra.mxu0 0.0
        %1317 = vmatprep.subr.mxu0 0.0
        %1318 = vmatpush1.msra.mxu0 0.0
        %1319 = vmatprep.subr.mxu0 0.0
        %1320 = vmatpush1.msra.mxu0 0.0
        %1321 = vmatprep.subr.mxu0 0.0
        %1322 = vmatpush1.msra.mxu0 0.0
        %1323 = vmatprep.mubr.f32.mxu0 0.0
        %1324 = vmatmul.mubr.f32.gmra.mrb[0].mxu0 %v1257
        %v1325 = vpop.f32.mrb[0].mxu0
        %v1326 = vadd.f32 %v572, %v1325
        %v1327 = vpop.f32.mrb[0].mxu0
        %1328 = vdwg.mxu0
        %v1329 = vld [vmem:[%s5] sm:$0x1]
        %v1330 = vld [vmem:[%s6] sm:$0x1]
        %v1331 = vsel %vm1255, %v1326, 0.0
        %1332 = vadd.xlane.f32.xlu0 %v1331
        %v1333 = vpop.xlane.xlu0 %1332
        %v1334 = vrcp.pop 32.0
        %v1335 = vmul.f32 %v1333, %v1334
        %v1336 = vsub.f32 %v1326, %v1335
        %v1337 = vmul.f32 %v1336, %v1336
        %v1338 = vsel %vm1255, %v1337, 0.0
        %1339 = vadd.xlane.f32.xlu0 %v1338
        %v1340 = vpop.xlane.xlu0 %1339
        %v1341 = vmul.f32 %v1340, %v1334
        %v1342 = vadd.f32 %v1341, 1e-05
        %v1343 = vrsqrt.pop %v1342
        %v1344 = vmul.f32 %v1336, %v1343
        %v1346 = vlaneseq
        %v1347 = vshrl.u32 %v1346, 7
        %v1348 = vsub.s32 0, %v1347
        %v1349 = vrot.slane %v1329, %v1348
        %v1351 = vmul.f32 %v1344, %v1349
        %v1353 = vlaneseq
        %v1354 = vshrl.u32 %v1353, 7
        %v1355 = vsub.s32 0, %v1354
        %v1356 = vrot.slane %v1330, %v1355
        %v1358 = vadd.f32 %v1351, %v1356
        %v1359 = vld [vmem:[%s7] sm:$0xff]
        %v1360 = vld [vmem:[%s7 + $0x8] sm:$0xff]
        %v1361 = vld [vmem:[%s7 + $0x10] sm:$0xff]
        %v1362 = vld [vmem:[%s7 + $0x18] sm:$0xff]
        %v1363 = vld [vmem:[%s8] sm:$0x1]
        %v1365 = vlaneseq
        %v1366 = vshrl.u32 %v1365, 7
        %v1367 = vsub.s32 0, %v1366
        %v1368 = vrot.slane %v1363, %v1367
        %v1371 = vsel %vm1255, %v1358, 0
        %1373 = vmatprep.subr.mxu0 0.0
        %1374 = vmatpush1.msra.mxu0 %v1359
        %1375 = vmatprep.subr.mxu0 0.0
        %1376 = vmatpush1.msra.mxu0 %v1360
        %1377 = vmatprep.subr.mxu0 0.0
        %1378 = vmatpush1.msra.mxu0 %v1361
        %1379 = vmatprep.subr.mxu0 0.0
        %1380 = vmatpush1.msra.mxu0 %v1362
        %1381 = vmatprep.subr.mxu0 0.0
        %1382 = vmatpush1.msra.mxu0 0.0
        %1383 = vmatprep.subr.mxu0 0.0
        %1384 = vmatpush1.msra.mxu0 0.0
        %1385 = vmatprep.subr.mxu0 0.0
        %1386 = vmatpush1.msra.mxu0 0.0
        %1387 = vmatprep.subr.mxu0 0.0
        %1388 = vmatpush1.msra.mxu0 0.0
        %1389 = vmatprep.subr.mxu0 0.0
        %1390 = vmatpush1.msra.mxu0 0.0
        %1391 = vmatprep.subr.mxu0 0.0
        %1392 = vmatpush1.msra.mxu0 0.0
        %1393 = vmatprep.subr.mxu0 0.0
        %1394 = vmatpush1.msra.mxu0 0.0
        %1395 = vmatprep.subr.mxu0 0.0
        %1396 = vmatpush1.msra.mxu0 0.0
        %1397 = vmatprep.subr.mxu0 0.0
        %1398 = vmatpush1.msra.mxu0 0.0
        %1399 = vmatprep.subr.mxu0 0.0
        %1400 = vmatpush1.msra.mxu0 0.0
        %1401 = vmatprep.subr.mxu0 0.0
        %1402 = vmatpush1.msra.mxu0 0.0
        %1403 = vmatprep.subr.mxu0 0.0
        %1404 = vmatpush1.msra.mxu0 0.0
        %1405 = vmatprep.subr.mxu0 0.0
        %1406 = vmatpush1.msra.mxu0 0.0
        %1407 = vmatprep.subr.mxu0 0.0
        %1408 = vmatpush1.msra.mxu0 0.0
        %1409 = vmatprep.subr.mxu0 0.0
        %1410 = vmatpush1.msra.mxu0 0.0
        %1411 = vmatprep.subr.mxu0 0.0
        %1412 = vmatpush1.msra.mxu0 0.0
        %1413 = vmatprep.subr.mxu0 0.0
        %1414 = vmatpush1.msra.mxu0 0.0
        %1415 = vmatprep.subr.mxu0 0.0
        %1416 = vmatpush1.msra.mxu0 0.0
        %1417 = vmatprep.subr.mxu0 0.0
        %1418 = vmatpush1.msra.mxu0 0.0
        %1419 = vmatprep.subr.mxu0 0.0
        %1420 = vmatpush1.msra.mxu0 0.0
        %1421 = vmatprep.subr.mxu0 0.0
        %1422 = vmatpush1.msra.mxu0 0.0
        %1423 = vmatprep.subr.mxu0 0.0
        %1424 = vmatpush1.msra.mxu0 0.0
        %1425 = vmatprep.subr.mxu0 0.0
        %1426 = vmatpush1.msra.mxu0 0.0
        %1427 = vmatprep.subr.mxu0 0.0
        %1428 = vmatpush1.msra.mxu0 0.0
        %1429 = vmatprep.subr.mxu0 0.0
        %1430 = vmatpush1.msra.mxu0 0.0
        %1431 = vmatprep.subr.mxu0 0.0
        %1432 = vmatpush1.msra.mxu0 0.0
        %1433 = vmatprep.subr.mxu0 0.0
        %1434 = vmatpush1.msra.mxu0 0.0
        %1435 = vmatprep.subr.mxu0 0.0
        %1436 = vmatpush1.msra.mxu0 0.0
        %1437 = vmatprep.mubr.f32.mxu0 0.0
        %1438 = vmatmul.mubr.f32.gmra.mrb[0].mxu0 %v1371
        %v1439 = vpop.f32.mrb[0].mxu0
        %v1440 = vadd.f32 %v1368, %v1439
        %v1441 = vpop.f32.mrb[0].mxu0
        %1442 = vdwg.mxu0
        %v1443 = vmax.f32 %v1440, 0.0
        %v1444 = vld [vmem:[%s9] sm:$0xff]
        %v1445 = vld [vmem:[%s9 + $0x8] sm:$0xff]
        %v1446 = vld [vmem:[%s9 + $0x10] sm:$0xff]
        %v1447 = vld [vmem:[%s9 + $0x18] sm:$0xff]
        %v1448 = vld [vmem:[%s9 + $0x20] sm:$0xff]
        %v1449 = vld [vmem:[%s9 + $0x28] sm:$0xff]
        %v1450 = vld [vmem:[%s9 + $0x30] sm:$0xff]
        %v1451 = vld [vmem:[%s9 + $0x38] sm:$0xff]
        %v1452 = vld [vmem:[%s10] sm:$0x1]
        %v1454 = vlaneseq
        %v1455 = vshrl.u32 %v1454, 7
        %v1456 = vsub.s32 0, %v1455
        %v1457 = vrot.slane %v1452, %v1456
        %vm1459 = vcmask 523264
        %v1461 = vsel %vm1459, %v1443, 0
        %1463 = vmatprep.subr.mxu0 0.0
        %1464 = vmatpush1.msra.mxu0 %v1444
        %1465 = vmatprep.subr.mxu0 0.0
        %1466 = vmatpush1.msra.mxu0 %v1445
        %1467 = vmatprep.subr.mxu0 0.0
        %1468 = vmatpush1.msra.mxu0 %v1446
        %1469 = vmatprep.subr.mxu0 0.0
        %1470 = vmatpush1.msra.mxu0 %v1447
        %1471 = vmatprep.subr.mxu0 0.0
        %1472 = vmatpush1.msra.mxu0 %v1448
        %1473 = vmatprep.subr.mxu0 0.0
        %1474 = vmatpush1.msra.mxu0 %v1449
        %1475 = vmatprep.subr.mxu0 0.0
        %1476 = vmatpush1.msra.mxu0 %v1450
        %1477 = vmatprep.subr.mxu0 0.0
        %1478 = vmatpush1.msra.mxu0 %v1451
        %1479 = vmatprep.subr.mxu0 0.0
        %1480 = vmatpush1.msra.mxu0 0.0
        %1481 = vmatprep.subr.mxu0 0.0
        %1482 = vmatpush1.msra.mxu0 0.0
        %1483 = vmatprep.subr.mxu0 0.0
        %1484 = vmatpush1.msra.mxu0 0.0
        %1485 = vmatprep.subr.mxu0 0.0
        %1486 = vmatpush1.msra.mxu0 0.0
        %1487 = vmatprep.subr.mxu0 0.0
        %1488 = vmatpush1.msra.mxu0 0.0
        %1489 = vmatprep.subr.mxu0 0.0
        %1490 = vmatpush1.msra.mxu0 0.0
        %1491 = vmatprep.subr.mxu0 0.0
        %1492 = vmatpush1.msra.mxu0 0.0
        %1493 = vmatprep.subr.mxu0 0.0
        %1494 = vmatpush1.msra.mxu0 0.0
        %1495 = vmatprep.subr.mxu0 0.0
        %1496 = vmatpush1.msra.mxu0 0.0
        %1497 = vmatprep.subr.mxu0 0.0
        %1498 = vmatpush1.msra.mxu0 0.0
        %1499 = vmatprep.subr.mxu0 0.0
        %1500 = vmatpush1.msra.mxu0 0.0
        %1501 = vmatprep.subr.mxu0 0.0
        %1502 = vmatpush1.msra.mxu0 0.0
        %1503 = vmatprep.subr.mxu0 0.0
        %1504 = vmatpush1.msra.mxu0 0.0
        %1505 = vmatprep.subr.mxu0 0.0
        %1506 = vmatpush1.msra.mxu0 0.0
        %1507 = vmatprep.subr.mxu0 0.0
        %1508 = vmatpush1.msra.mxu0 0.0
        %1509 = vmatprep.subr.mxu0 0.0
        %1510 = vmatpush1.msra.mxu0 0.0
        %1511 = vmatprep.subr.mxu0 0.0
        %1512 = vmatpush1.msra.mxu0 0.0
        %1513 = vmatprep.subr.mxu0 0.0
        %1514 = vmatpush1.msra.mxu0 0.0
        %1515 = vmatprep.subr.mxu0 0.0
        %1516 = vmatpush1.msra.mxu0 0.0
        %1517 = vmatprep.subr.mxu0 0.0
        %1518 = vmatpush1.msra.mxu0 0.0
        %1519 = vmatprep.subr.mxu0 0.0
        %1520 = vmatpush1.msra.mxu0 0.0
        %1521 = vmatprep.subr.mxu0 0.0
        %1522 = vmatpush1.msra.mxu0 0.0
        %1523 = vmatprep.subr.mxu0 0.0
        %1524 = vmatpush1.msra.mxu0 0.0
        %1525 = vmatprep.subr.mxu0 0.0
        %1526 = vmatpush1.msra.mxu0 0.0
        %1527 = vmatprep.mubr.f32.mxu0 0.0
        %1528 = vmatmul.mubr.f32.gmra.mrb[0].mxu0 %v1461
        %v1529 = vpop.f32.mrb[0].mxu0
        %v1530 = vadd.f32 %v1457, %v1529
        %v1531 = vpop.f32.mrb[0].mxu0
        %1532 = vdwg.mxu0
        %v1533 = vadd.f32 %v1530, %v1358
        %v1534 = vld [vmem:[%s11] sm:$0x1]
        %v1535 = vld [vmem:[%s12] sm:$0x1]
        %v1536 = vsel %vm1255, %v1533, 0.0
        %1537 = vadd.xlane.f32.xlu0 %v1536
        %v1538 = vpop.xlane.xlu0 %1537
        %v1539 = vmul.f32 %v1538, %v1334
        %v1540 = vsub.f32 %v1533, %v1539
        %v1541 = vmul.f32 %v1540, %v1540
        %v1542 = vsel %vm1255, %v1541, 0.0
        %1543 = vadd.xlane.f32.xlu0 %v1542
        %v1544 = vpop.xlane.xlu0 %1543
        %v1545 = vmul.f32 %v1544, %v1334
        %v1546 = vadd.f32 %v1545, 1e-05
        %v1547 = vrsqrt.pop %v1546
        %v1548 = vmul.f32 %v1540, %v1547
        %v1550 = vlaneseq
        %v1551 = vshrl.u32 %v1550, 7
        %v1552 = vsub.s32 0, %v1551
        %v1553 = vrot.slane %v1534, %v1552
        %v1555 = vmul.f32 %v1548, %v1553
        %v1557 = vlaneseq
        %v1558 = vshrl.u32 %v1557, 7
        %v1559 = vsub.s32 0, %v1558
        %v1560 = vrot.slane %v1535, %v1559
        %v1562 = vadd.f32 %v1555, %v1560
        %1563 = vst.msk [vmem:[%s539] sm:$0xff] %vm1255, %v1562
        %s1564 = sand.u32 %s351, 1
        %s1565 = scalar_lea.sflag [#allocation3], %s1564
        %s1566 = sand.u32 %s351, 1
        %s1567 = smul.addr %s1566, 8
        %s1568 = scalar_lea.vmem [#allocation2], %s1567
        %s1569 = sand.u32 %s379, 1
        %s1570 = scalar_lea.sflag [#allocation5], %s1569
        %s1571 = sand.u32 %s379, 1
        %s1572 = smul.addr %s1571, 32
        %s1573 = scalar_lea.vmem [#allocation4], %s1572
        // Predicated region
        $region73: #{encoder_layer.3} parent=71 // pred_check
          %p1574 = pneg %p361
        $region74: #{encoder_layer.3} parent=71 // pred_check_branch
          %1576 = sbr.rel (%p1574) target = $region76
        $region75: #{encoder_layer.3} parent=71 // pred_region
          %s1578 = ssub.s32 128, 128
          %1579 = vsyncadd %s1565, %s1578
          %s1580 = sadd.s32 %s37, %s36
          %s1581 = smul.addr %s1580, 128
          %s1582 = scalar_lea.hbm %s13, %s1581
          %s1584 = sshll.u32 %s1568, 4
          %s1585 = int_to_ptr.vmem [resolvable:$true] %s1584
          %1587 = dma.vmem_to_hbm [thread:$0]  %s1585, 128, %s1582, %s1565
        $region76: #{encoder_layer.3} parent=71 // pred_fallthru
          _
        // Predicated region
        $region77: #{encoder_layer.3} parent=71 // pred_check
          %p1588 = pneg %p389
        $region78: #{encoder_layer.3} parent=71 // pred_check_branch
          %1590 = sbr.rel (%p1588) target = $region80
        $region79: #{encoder_layer.3} parent=71 // pred_region
          %s1592 = ssub.s32 512, 512
          %1593 = vsyncadd %s1570, %s1592
          %s1594 = smul.addr %s36, 4
          %s1595 = sadd.s32 %s37, %s1594
          %s1596 = smul.addr %s1595, 128
          %s1597 = scalar_lea.hbm %s14, %s1596
          %s1598 = sshll.u32 %s1573, 4
          %s1599 = int_to_ptr.vmem [resolvable:$true] %s1598
          %1604 = dma.vmem_to_hbm [thread:$0]  %s1599, 512, %s1597, %s1570, 128, 128, 8
        $region80: #{encoder_layer.3} parent=71 // pred_fallthru
          _
      $region72: #{encoder_layer.3} parent=5 // pred_fallthru
        _
      %p1605 = scmp.le.s32.totalorder 2, %s27
      // Predicated region
      $region81: #{encoder_layer.3} parent=5 // pred_check
        %p1606 = pneg %p1605
      $region82: #{encoder_layer.3} parent=5 // pred_check_branch
        %1608 = sbr.rel (%p1606) target = $region84
      $region83: #{encoder_layer.3} parent=5 // pred_region
        %s1609 = ssub.s32 %s27, 2
        // Predicated region
        $region85: #{encoder_layer.3} parent=83 // pred_check
          %p1610 = pneg %p367
        $region86: #{encoder_layer.3} parent=83 // pred_check_branch
          %1612 = sbr.rel (%p1610) target = $region88
        $region87: #{encoder_layer.3} parent=83 // pred_region
          %s1613 = sand.u32 %s352, 1
          %s1614 = scalar_lea.sflag [#allocation3], %s1613
          %s1615 = sand.u32 %s352, 1
          %s1616 = smul.addr %s1615, 8
          %s1617 = scalar_lea.vmem [#allocation2], %s1616
          %1618 = dma.done %s1614, 128
        $region88: #{encoder_layer.3} parent=83 // pred_fallthru
          _
        // Predicated region
        $region89: #{encoder_layer.3} parent=83 // pred_check
          %p1619 = pneg %p395
        $region90: #{encoder_layer.3} parent=83 // pred_check_branch
          %1621 = sbr.rel (%p1619) target = $region92
        $region91: #{encoder_layer.3} parent=83 // pred_region
          %s1622 = sand.u32 %s380, 1
          %s1623 = scalar_lea.sflag [#allocation5], %s1622
          %s1624 = sand.u32 %s380, 1
          %s1625 = smul.addr %s1624, 32
          %s1626 = scalar_lea.vmem [#allocation4], %s1625
          %1627 = dma.done %s1623, 512
        $region92: #{encoder_layer.3} parent=83 // pred_fallthru
          _
      $region84: #{encoder_layer.3} parent=5 // pred_fallthru
        _
    $region6: #{encoder_layer.3} parent=1 // loop_footer
      %s31 = sadd.s32 1, %s27
    $region7: #{encoder_layer.3} parent=1 // loop_footer_branch
      %26 = sbr.rel target = $region3
    $region8: #{encoder_layer.3} parent=1 // loop_exit
      _
    %1628 = vsyncpa [#allocation3], 1
    %s1629 = scalar_lea.sflag [#allocation3], 1
    %1630 = vsyncpa %s1629, 1
    %1631 = vsyncpa [#allocation5], 1
    %s1632 = scalar_lea.sflag [#allocation5], 1
    %1633 = vsyncpa %s1632, 1

</llo_original>
